<compile_context>
chip_gen: v5e
topology: v5e:2x2
jax: 0.10.0
libtpu: 0.0.40
codegen_flags: <defaults>
</compile_context>

<pallas_src>
import jax
import jax.numpy as jnp
from jax import lax
from jax.experimental import pallas as pl
from jax.experimental.pallas import tpu as pltpu

# ----------------------------- hyperparameters (small synthetic config) ----------------
POS_DIM = 4
DEP_DIM = 6
DIR_DIM = 3
HIDDEN_DIM = 32            # module uses 250; small here per instructions
NUM_LAYERS = 1
NUM_RELATIONS = 5
EMBEDDING_DIM = 16
N_DIRECTIONS = 2           # bidirectional = True
INPUT_DIM = POS_DIM + DEP_DIM + EMBEDDING_DIM + DIR_DIM          # 29
OUTPUT_DIM = N_DIRECTIONS * HIDDEN_DIM + 2 * EMBEDDING_DIM       # 96
DROPOUT_P = 0.0            # inference: F.dropout with p=0.0 is the identity
# TODO(synk): dropout with p>0 would need pltpu.prng_seed/prng_random_bits; p=0.0 here.


def _round_up(x, m):
    return ((x + m - 1) // m) * m


GATE_W = 4 * HIDDEN_DIM                  # per-direction gate width; 128 at H=32 (one lane tile)
assert GATE_W % 128 == 0, "4*H must be lane-tile aligned; at production H pad H up to 128*k"
REL_P = _round_up(NUM_RELATIONS, 128)    # lane-padded logits width (lane-dense output stores)
P_SUB = 8                                # sublane tile for the paths axis


# ----------------------------- fused Pallas kernel -------------------------------------
def _fused_kernel(x_ref, len_ref, nodes_ref, cmat_ref,
                  wih_ref, whhf_ref, whhb_ref, whead_ref, wbias_ref,
                  out_ref, gx_ref):
    # x_ref:     (T*N, D+1)  rows = t*N + (b*P_pad + p); last column is 1.0 (bias fold)
    # len_ref:   (N, 1)      int32 path lengths (0 for padded paths)
    # nodes_ref: (B, 2E)     node-pair embeddings
    # cmat_ref:  (B, N)      block-diagonal path-count matrix (pooling weights)
    # wih_ref:   (D+1, 2*G)  columns = [fwd i|f|g|o | bwd i|f|g|o], bias row appended
    # whhf/whhb: (H, G)      recurrent weights, G = 4*H = 128 (no padding)
    # whead_ref: (2E+2H, RP) de-interleaved stacked classifier;  wbias_ref: (1, RP)
    # out_ref:   (B, RP)     log-probabilities (first NUM_RELATIONS lanes real)
    # gx_ref:    (T*N, 2*G)  VMEM scratch for the hoisted input projection
    N = len_ref.shape[0]
    T = x_ref.shape[0] // N
    H = whhf_ref.shape[0]
    G = 4 * H

    # ---- hoisted input projection: ONE MXU matmul for all timesteps & both directions ----
    gx_ref[...] = jnp.dot(x_ref[...], wih_ref[...], preferred_element_type=jnp.float32)

    # ---- all T packed-sequence masks computed once (single iota + compare) ----
    lens = len_ref[...]                                              # (N, 1)
    tid = lax.broadcasted_iota(jnp.int32, (T, N, 1), 0)
    masks = lens[None, :, :] > tid                                   # (T, N, 1) bool

    whh_f = whhf_ref[...]
    whh_b = whhb_ref[...]

    def lstm_cell(g_pre, h, c, whh):
        # PyTorch LSTM gate order: i, f, g, o (32-lane sub-slices of one 128-lane tile)
        gates = g_pre + jnp.dot(h, whh, preferred_element_type=jnp.float32)   # (N, G)
        i = jax.nn.sigmoid(gates[:, 0:H])
        f = jax.nn.sigmoid(gates[:, H:2 * H])
        g = jnp.tanh(gates[:, 2 * H:3 * H])
        o = jax.nn.sigmoid(gates[:, 3 * H:4 * H])
        c_new = f * c + i * g
        h_new = o * jnp.tanh(c_new)
        return h_new, c_new

    zero = jnp.zeros((N, H), jnp.float32)
    h_f, c_f, h_b, c_b = zero, zero, zero, zero
    # Fully unrolled time loop (T small & static); states live in vregs as loop carries,
    # per-step gate pre-activations are re-loaded from the VMEM scratch (vld slots are idle).
    for t in range(T):
        # forward direction: update only while t < length (pack_padded_sequence emulation)
        hn, cn = lstm_cell(gx_ref[t * N:(t + 1) * N, 0:G], h_f, c_f, whh_f)
        m = masks[t]
        h_f = jnp.where(m, hn, h_f)
        c_f = jnp.where(m, cn, c_f)
        # backward direction: walk T-1 .. 0 with the same masks (packed reverse pass)
        tb = T - 1 - t
        hn, cn = lstm_cell(gx_ref[tb * N:(tb + 1) * N, G:2 * G], h_b, c_b, whh_b)
        mb = masks[tb]
        h_b = jnp.where(mb, hn, h_b)
        c_b = jnp.where(mb, cn, c_b)

    # ---- fused head: 2 MXU matmuls (block-diagonal pooling dot + stacked classifier) ----
    h_cat = jnp.concatenate([h_f, h_b], axis=1)                                # (N, 2H)
    weighted = jnp.dot(cmat_ref[...], h_cat, preferred_element_type=jnp.float32)   # (B, 2H)
    rep = jnp.concatenate([nodes_ref[...], weighted], axis=1)                  # (B, 2E+2H)
    logits = (jnp.dot(rep, whead_ref[...], preferred_element_type=jnp.float32)
              + wbias_ref[...])                                                # (B, RP)
    # dropout(p=0.0) is the identity; mask padded relation lanes (finite f32 sentinel),
    # then log_softmax along dim=1
    col = lax.broadcasted_iota(jnp.int32, logits.shape, 1)
    logits = jnp.where(col < NUM_RELATIONS, logits, -1e30)
    mx = jnp.max(logits, axis=1, keepdims=True)
    z = logits - mx
    lse = jnp.log(jnp.sum(jnp.exp(z), axis=1, keepdims=True))
    out_ref[...] = z - lse


def _fused_pallas(x, lengths, nodes_embed, counts_mat, kp):
    B = counts_mat.shape[0]
    RP = kp["w_bias"].shape[1]
    vmem = pl.BlockSpec(memory_space=pltpu.MemorySpace.VMEM)   # full array resident in VMEM
    out = pl.pallas_call(
        _fused_kernel,
        out_shape=jax.ShapeDtypeStruct((B, RP), jnp.float32),
        in_specs=[vmem] * 9,
        out_specs=vmem,
        scratch_shapes=[pltpu.VMEM((x.shape[0], kp["wih_cat"].shape[1]), jnp.float32)],
        compiler_params=pltpu.CompilerParams(vmem_limit_bytes=4 * 1024 * 1024),
    )(x, lengths, nodes_embed, counts_mat,
      kp["wih_cat"], kp["whh_f"], kp["whh_b"], kp["w_head"], kp["w_bias"])
    return out


# ----------------------------- one-time kernel weight preparation ----------------------
def prepare_kernel_params(params):
    H, R, RP = HIDDEN_DIM, NUM_RELATIONS, REL_P
    # fwd/bwd input-projection weights side by side; bias folded in as an extra row
    # (the wrapper appends a ones column to x)
    wih_cat = jnp.concatenate([
        jnp.concatenate([params["wih_f_T"], params["wih_b_T"]], axis=1),      # (D, 8H)
        jnp.concatenate([params["b_f"], params["b_b"]], axis=1),              # (1, 8H)
    ], axis=0)                                                                # (D+1, 8H)
    # recurrent weights: no padding needed (4H = 128 exactly fills one lane tile)
    whh_f = params["whh_f_T"]                                                 # (H, 4H)
    whh_b = params["whh_b_T"]                                                 # (H, 4H)
    # De-interleave the classifier rows so no runtime interleave of (h_f, h_b) is needed:
    # PyTorch's permute(1,2,0).reshape gives feature order [f0, b0, f1, b1, ...].
    wp = params["w_paths_T"]                                                  # (2H, R)
    w_head = jnp.concatenate([params["w_nodes_T"], wp[0::2], wp[1::2]], axis=0)  # (2E+2H, R)
    w_head = jnp.pad(w_head, ((0, 0), (0, RP - R)))                           # (2E+2H, RP)
    w_bias = jnp.pad(params["w_bias"], ((0, 0), (0, RP - R)))                 # (1, RP)
    return {"wih_cat": wih_cat, "whh_f": whh_f, "whh_b": whh_b,
            "w_head": w_head, "w_bias": w_bias}


# ----------------------------- glue: embeddings + full forward -------------------------
def _embed(params, nodes, paths):
    # paths: (B, P, T, 4) int32 -> time-major (B, T, P, D) float32 path features
    B = nodes.shape[0]
    p_t = jnp.transpose(paths, (0, 2, 1, 3))
    word = params["name_emb"][p_t[..., 0]]
    pos = params["pos_emb"][p_t[..., 1]]
    dep = params["dep_emb"][p_t[..., 2]]
    dire = params["dir_emb"][p_t[..., 3]]
    paths_embed = jnp.concatenate([word, pos, dep, dire], axis=-1).astype(jnp.float32)
    nodes_embed = params["name_emb"][nodes].reshape(B, 2 * EMBEDDING_DIM).astype(jnp.float32)
    return nodes_embed, paths_embed


def relation_predictor_forward(params, kparams, nodes, paths, counts, edgecounts,
                               max_paths, max_edges):
    B = nodes.shape[0]
    P, T = max_paths, max_edges
    P_pad = _round_up(P, P_SUB)
    N = B * P_pad                                                    # recurrence rows per step
    nodes_embed, paths_embed = _embed(params, nodes, paths)          # (B,2E), (B,T,P,D)

    # Pad the paths axis to the sublane tile (8) and fold batch into the recurrence rows:
    # row index = t*N + (b*P_pad + p). Padded paths get length 0 and count 0, so they stay
    # at h=0 and never contribute to the pooling matmul.
    pe = jnp.pad(paths_embed, ((0, 0), (0, 0), (0, P_pad - P), (0, 0)))
    x = jnp.transpose(pe, (1, 0, 2, 3)).reshape(T * N, INPUT_DIM)
    x = jnp.concatenate([x, jnp.ones((T * N, 1), jnp.float32)], axis=1)   # bias-fold column
    lengths = jnp.pad(edgecounts.astype(jnp.int32), ((0, 0), (0, P_pad - P))).reshape(N, 1)
    counts_pad = jnp.pad(counts.astype(jnp.float32), ((0, 0), (0, P_pad - P)))   # (B, P_pad)
    # block-diagonal pooling matrix: counts_mat[b, b*P_pad + p] = counts[b, p]
    counts_mat = (jnp.eye(B, dtype=jnp.float32)[:, :, None] * counts_pad[None]).reshape(B, N)

    out = _fused_pallas(x, lengths, nodes_embed, counts_mat, kparams)   # (B, REL_P)
    return out[:, :NUM_RELATIONS]


# ----------------------------- pure-JAX reference (PyTorch-faithful ordering) ----------
def _ref_lstm_dir(x, lengths, wih_T, whh_T, b, reverse):
    N, T, _ = x.shape
    H = HIDDEN_DIM
    h = jnp.zeros((N, H), jnp.float32)
    c = jnp.zeros((N, H), jnp.float32)
    ts = list(range(T))
    if reverse:
        ts = ts[::-1]
    for t in ts:
        gates = x[:, t, :] @ wih_T + h @ whh_T + b
        i = jax.nn.sigmoid(gates[:, :H])
        f = jax.nn.sigmoid(gates[:, H:2 * H])
        g = jnp.tanh(gates[:, 2 * H:3 * H])
        o = jax.nn.sigmoid(gates[:, 3 * H:])
        c_new = f * c + i * g
        h_new = o * jnp.tanh(c_new)
        m = lengths > t
        h = jnp.where(m, h_new, h)
        c = jnp.where(m, c_new, c)
    return h


def reference_forward(params, nodes, paths, counts, edgecounts, max_paths, max_edges):
    B = nodes.shape[0]
    nodes_embed, paths_embed = _embed(params, nodes, paths)
    x = jnp.transpose(paths_embed, (0, 2, 1, 3)).reshape(B * max_paths, max_edges, INPUT_DIM)
    lengths = edgecounts.reshape(B * max_paths, 1).astype(jnp.int32)
    h_f = _ref_lstm_dir(x, lengths, params["wih_f_T"], params["whh_f_T"], params["b_f"], False)
    h_b = _ref_lstm_dir(x, lengths, params["wih_b_T"], params["whh_b_T"], params["b_b"], True)
    paths_out = jnp.stack([h_f, h_b], axis=-1).reshape(B, max_paths, N_DIRECTIONS * HIDDEN_DIM)
    weighted = jnp.einsum("bpd,bp->bd", paths_out, counts.astype(jnp.float32))
    rep = jnp.concatenate([nodes_embed, weighted], axis=-1)
    W_T = jnp.concatenate([params["w_nodes_T"], params["w_paths_T"]], axis=0)
    logits = rep @ W_T + params["w_bias"]
    return jax.nn.log_softmax(logits, axis=1)


# ----------------------------- deterministic parameter init ----------------------------
def init_params(key, n_vocab, n_pos, n_dep, n_dir):
    ks = jax.random.split(key, 16)
    H, D = HIDDEN_DIM, INPUT_DIM

    def xavier(k, shape):
        bound = (6.0 / (shape[0] + shape[1])) ** 0.5
        return jax.random.uniform(k, shape, minval=-bound, maxval=bound, dtype=jnp.float32)

    name_emb = 0.1 * jax.random.normal(ks[0], (n_vocab, EMBEDDING_DIM), dtype=jnp.float32)
    pos_emb = xavier(ks[1], (n_pos, POS_DIM))
    dep_emb = xavier(ks[2], (n_dep, DEP_DIM))
    dir_emb = xavier(ks[3], (n_dir, DIR_DIM))

    bound = 1.0 / (H ** 0.5)

    def unif(k, shape):
        return jax.random.uniform(k, shape, minval=-bound, maxval=bound, dtype=jnp.float32)

    wih_f = unif(ks[4], (4 * H, D)); whh_f = unif(ks[5], (4 * H, H))
    b_ih_f = unif(ks[6], (4 * H,));  b_hh_f = unif(ks[7], (4 * H,))
    wih_b = unif(ks[8], (4 * H, D)); whh_b = unif(ks[9], (4 * H, H))
    b_ih_b = unif(ks[10], (4 * H,)); b_hh_b = unif(ks[11], (4 * H,))

    w_bound = 1.0 / (OUTPUT_DIM ** 0.5)
    W = jax.random.uniform(ks[12], (NUM_RELATIONS, OUTPUT_DIM),
                           minval=-w_bound, maxval=w_bound, dtype=jnp.float32)
    W_bias = jax.random.uniform(ks[13], (NUM_RELATIONS,),
                                minval=-w_bound, maxval=w_bound, dtype=jnp.float32)
    W_T = W.T
    return {
        "name_emb": name_emb, "pos_emb": pos_emb, "dep_emb": dep_emb, "dir_emb": dir_emb,
        "wih_f_T": wih_f.T, "whh_f_T": whh_f.T, "b_f": (b_ih_f + b_hh_f).reshape(1, 4 * H),
        "wih_b_T": wih_b.T, "whh_b_T": whh_b.T, "b_b": (b_ih_b + b_hh_b).reshape(1, 4 * H),
        "w_nodes_T": W_T[: 2 * EMBEDDING_DIM],
        "w_paths_T": W_T[2 * EMBEDDING_DIM:],
        "w_bias": W_bias.reshape(1, NUM_RELATIONS),
    }


# ----------------------------- main -----------------------------------------------------
if __name__ == "__main__":
    key = jax.random.PRNGKey(0)
    B, max_paths, max_edges = 2, 3, 4
    n_vocab, n_pos, n_dep, n_dir = 20, 10, 12, 4

    kp, kn, kw, kx, ky, kz, kc, ke = jax.random.split(key, 8)
    params = init_params(kp, n_vocab, n_pos, n_dep, n_dir)
    kparams = prepare_kernel_params(params)     # one-time de-interleaved / fused layouts

    nodes = jax.random.randint(kn, (B, 2), 0, n_vocab, dtype=jnp.int32)
    paths = jnp.concatenate([
        jax.random.randint(kw, (B, max_paths, max_edges, 1), 0, n_vocab, dtype=jnp.int32),
        jax.random.randint(kx, (B, max_paths, max_edges, 1), 0, n_pos, dtype=jnp.int32),
        jax.random.randint(ky, (B, max_paths, max_edges, 1), 0, n_dep, dtype=jnp.int32),
        jax.random.randint(kz, (B, max_paths, max_edges, 1), 0, n_dir, dtype=jnp.int32),
    ], axis=-1)
    counts = jax.random.uniform(kc, (B, max_paths), dtype=jnp.float32)
    edgecounts = jax.random.randint(ke, (B, max_paths), 1, max_edges + 1, dtype=jnp.int32)

    out = relation_predictor_forward(params, kparams, nodes, paths, counts, edgecounts,
                                     max_paths, max_edges)
    out = jax.block_until_ready(out)

    ref = reference_forward(params, nodes, paths, counts, edgecounts, max_paths, max_edges)
    ref = jax.block_until_ready(ref)

    assert out.shape == (B, NUM_RELATIONS)
    assert bool(jnp.all(jnp.isfinite(out)))
    assert bool(jnp.allclose(out, ref, atol=1e-3, rtol=1e-3)), (out, ref)
    print("KERNEL_OK")
</pallas_src>

<mosaic_0001>
module attributes {stable_mosaic.version = 11 : i64} {
  func.func @_fused_kernel(%arg0: memref<64x30xf32, #tpu.memory_space<vmem>>, %arg1: memref<16x1xi32, #tpu.memory_space<vmem>>, %arg2: memref<2x32xf32, #tpu.memory_space<vmem>>, %arg3: memref<2x16xf32, #tpu.memory_space<vmem>>, %arg4: memref<30x256xf32, #tpu.memory_space<vmem>>, %arg5: memref<32x128xf32, #tpu.memory_space<vmem>>, %arg6: memref<32x128xf32, #tpu.memory_space<vmem>>, %arg7: memref<96x128xf32, #tpu.memory_space<vmem>>, %arg8: memref<1x128xf32, #tpu.memory_space<vmem>>, %arg9: memref<2x128xf32, #tpu.memory_space<vmem>>, %arg10: memref<64x256xf32, #tpu.memory_space<vmem>>) attributes {dimension_semantics = [], scalar_prefetch = 0 : i64, scratch_operands = 1 : i64, tpu.core_type = #tpu.core_type<tc>} {
    %c0 = arith.constant 0 : index
    %c0_0 = arith.constant 0 : index
    %0 = vector.load %arg0[%c0, %c0_0] : memref<64x30xf32, #tpu.memory_space<vmem>>, vector<64x30xf32>
    %c0_1 = arith.constant 0 : index
    %c0_2 = arith.constant 0 : index
    %1 = vector.load %arg4[%c0_1, %c0_2] : memref<30x256xf32, #tpu.memory_space<vmem>>, vector<30x256xf32>
    %cst = arith.constant dense<0.000000e+00> : vector<64x256xf32>
    %2 = tpu.matmul %0, %1, %cst {dimension_numbers = #tpu.dot_dimension_numbers<[1], [0], [0], [1], [0, 0, 1, 1], [], []>} : vector<64x30xf32>, vector<30x256xf32>, vector<64x256xf32> -> vector<64x256xf32>
    %c0_3 = arith.constant 0 : index
    %c0_4 = arith.constant 0 : index
    %3 = vector.load %arg10[%c0_3, %c0_4] : memref<64x256xf32, #tpu.memory_space<vmem>>, vector<64x256xf32>
    tpu.vector_store %arg10[%c0_3, %c0_4], %2 {strides = array<i32>} : memref<64x256xf32, #tpu.memory_space<vmem>>, vector<64x256xf32>,
    %c0_5 = arith.constant 0 : index
    %c0_6 = arith.constant 0 : index
    %4 = vector.load %arg1[%c0_5, %c0_6] : memref<16x1xi32, #tpu.memory_space<vmem>>, vector<16x1xi32>
    %5 = tpu.iota {dimensions = array<i32: 0>} : vector<4x16x1xi32>
    %6 = vector.shape_cast %4 : vector<16x1xi32> to vector<1x16x1xi32>
    %7 = vector.broadcast %6 : vector<1x16x1xi32> to vector<4x16x1xi32>
    %8 = arith.cmpi sgt, %7, %5 : vector<4x16x1xi32>
    %c0_7 = arith.constant 0 : index
    %c0_8 = arith.constant 0 : index
    %9 = vector.load %arg5[%c0_7, %c0_8] : memref<32x128xf32, #tpu.memory_space<vmem>>, vector<32x128xf32>
    %c0_9 = arith.constant 0 : index
    %c0_10 = arith.constant 0 : index
    %10 = vector.load %arg6[%c0_9, %c0_10] : memref<32x128xf32, #tpu.memory_space<vmem>>, vector<32x128xf32>
    %cst_11 = arith.constant 0.000000e+00 : f32
    %11 = vector.broadcast %cst_11 : f32 to vector<16x32xf32>
    %c0_12 = arith.constant 0 : index
    %c0_13 = arith.constant 0 : index
    %12 = vector.load %arg10[%c0_12, %c0_13] : memref<64x256xf32, #tpu.memory_space<vmem>>, vector<16x128xf32>
    %cst_14 = arith.constant dense<0.000000e+00> : vector<16x128xf32>
    %13 = tpu.matmul %11, %9, %cst_14 {dimension_numbers = #tpu.dot_dimension_numbers<[1], [0], [0], [1], [0, 0, 1, 1], [], []>} : vector<16x32xf32>, vector<32x128xf32>, vector<16x128xf32> -> vector<16x128xf32>
    %14 = arith.addf %12, %13 : vector<16x128xf32>
    %15 = vector.extract_strided_slice %14 {offsets = [0, 0], sizes = [16, 32], strides = [1, 1]} : vector<16x128xf32> to vector<16x32xf32>
    %16 = arith.negf %15 : vector<16x32xf32>
    %17 = math.exp %16 : vector<16x32xf32>
    %cst_15 = arith.constant 1.000000e+00 : f32
    %18 = vector.broadcast %cst_15 : f32 to vector<16x32xf32>
    %19 = arith.addf %18, %17 : vector<16x32xf32>
    %20 = arith.divf %18, %19 : vector<16x32xf32>
    %21 = vector.extract_strided_slice %14 {offsets = [0, 32], sizes = [16, 32], strides = [1, 1]} : vector<16x128xf32> to vector<16x32xf32>
    %22 = arith.negf %21 : vector<16x32xf32>
    %23 = math.exp %22 : vector<16x32xf32>
    %cst_16 = arith.constant 1.000000e+00 : f32
    %24 = vector.broadcast %cst_16 : f32 to vector<16x32xf32>
    %25 = arith.addf %24, %23 : vector<16x32xf32>
    %26 = arith.divf %24, %25 : vector<16x32xf32>
    %27 = vector.extract_strided_slice %14 {offsets = [0, 64], sizes = [16, 32], strides = [1, 1]} : vector<16x128xf32> to vector<16x32xf32>
    %28 = math.tanh %27 : vector<16x32xf32>
    %29 = vector.extract_strided_slice %14 {offsets = [0, 96], sizes = [16, 32], strides = [1, 1]} : vector<16x128xf32> to vector<16x32xf32>
    %30 = arith.negf %29 : vector<16x32xf32>
    %31 = math.exp %30 : vector<16x32xf32>
    %cst_17 = arith.constant 1.000000e+00 : f32
    %32 = vector.broadcast %cst_17 : f32 to vector<16x32xf32>
    %33 = arith.addf %32, %31 : vector<16x32xf32>
    %34 = arith.divf %32, %33 : vector<16x32xf32>
    %35 = arith.mulf %26, %11 : vector<16x32xf32>
    %36 = arith.mulf %20, %28 : vector<16x32xf32>
    %37 = arith.addf %35, %36 : vector<16x32xf32>
    %38 = math.tanh %37 : vector<16x32xf32>
    %39 = arith.mulf %34, %38 : vector<16x32xf32>
    %40 = vector.extract_strided_slice %8 {offsets = [0, 0, 0], sizes = [1, 16, 1], strides = [1, 1, 1]} : vector<4x16x1xi1> to vector<1x16x1xi1>
    %41 = vector.shape_cast %40 : vector<1x16x1xi1> to vector<16x1xi1>
    %42 = vector.shape_cast %41 : vector<16x1xi1> to vector<16x1xi1>
    %43 = vector.broadcast %42 : vector<16x1xi1> to vector<16x32xi1>
    %44 = arith.select %43, %39, %11 : vector<16x32xi1>, vector<16x32xf32>
    %45 = vector.shape_cast %41 : vector<16x1xi1> to vector<16x1xi1>
    %46 = vector.broadcast %45 : vector<16x1xi1> to vector<16x32xi1>
    %47 = arith.select %46, %37, %11 : vector<16x32xi1>, vector<16x32xf32>
    %c48 = arith.constant 48 : index
    %c128 = arith.constant 128 : index
    %48 = vector.load %arg10[%c48, %c128] : memref<64x256xf32, #tpu.memory_space<vmem>>, vector<16x128xf32>
    %cst_18 = arith.constant dense<0.000000e+00> : vector<16x128xf32>
    %49 = tpu.matmul %11, %10, %cst_18 {dimension_numbers = #tpu.dot_dimension_numbers<[1], [0], [0], [1], [0, 0, 1, 1], [], []>} : vector<16x32xf32>, vector<32x128xf32>, vector<16x128xf32> -> vector<16x128xf32>
    %50 = arith.addf %48, %49 : vector<16x128xf32>
    %51 = vector.extract_strided_slice %50 {offsets = [0, 0], sizes = [16, 32], strides = [1, 1]} : vector<16x128xf32> to vector<16x32xf32>
    %52 = arith.negf %51 : vector<16x32xf32>
    %53 = math.exp %52 : vector<16x32xf32>
    %cst_19 = arith.constant 1.000000e+00 : f32
    %54 = vector.broadcast %cst_19 : f32 to vector<16x32xf32>
    %55 = arith.addf %54, %53 : vector<16x32xf32>
    %56 = arith.divf %54, %55 : vector<16x32xf32>
    %57 = vector.extract_strided_slice %50 {offsets = [0, 32], sizes = [16, 32], strides = [1, 1]} : vector<16x128xf32> to vector<16x32xf32>
    %58 = arith.negf %57 : vector<16x32xf32>
    %59 = math.exp %58 : vector<16x32xf32>
    %cst_20 = arith.constant 1.000000e+00 : f32
    %60 = vector.broadcast %cst_20 : f32 to vector<16x32xf32>
    %61 = arith.addf %60, %59 : vector<16x32xf32>
    %62 = arith.divf %60, %61 : vector<16x32xf32>
    %63 = vector.extract_strided_slice %50 {offsets = [0, 64], sizes = [16, 32], strides = [1, 1]} : vector<16x128xf32> to vector<16x32xf32>
    %64 = math.tanh %63 : vector<16x32xf32>
    %65 = vector.extract_strided_slice %50 {offsets = [0, 96], sizes = [16, 32], strides = [1, 1]} : vector<16x128xf32> to vector<16x32xf32>
    %66 = arith.negf %65 : vector<16x32xf32>
    %67 = math.exp %66 : vector<16x32xf32>
    %cst_21 = arith.constant 1.000000e+00 : f32
    %68 = vector.broadcast %cst_21 : f32 to vector<16x32xf32>
    %69 = arith.addf %68, %67 : vector<16x32xf32>
    %70 = arith.divf %68, %69 : vector<16x32xf32>
    %71 = arith.mulf %62, %11 : vector<16x32xf32>
    %72 = arith.mulf %56, %64 : vector<16x32xf32>
    %73 = arith.addf %71, %72 : vector<16x32xf32>
    %74 = math.tanh %73 : vector<16x32xf32>
    %75 = arith.mulf %70, %74 : vector<16x32xf32>
    %76 = vector.extract_strided_slice %8 {offsets = [3, 0, 0], sizes = [1, 16, 1], strides = [1, 1, 1]} : vector<4x16x1xi1> to vector<1x16x1xi1>
    %77 = vector.shape_cast %76 : vector<1x16x1xi1> to vector<16x1xi1>
    %78 = vector.shape_cast %77 : vector<16x1xi1> to vector<16x1xi1>
    %79 = vector.broadcast %78 : vector<16x1xi1> to vector<16x32xi1>
    %80 = arith.select %79, %75, %11 : vector<16x32xi1>, vector<16x32xf32>
    %81 = vector.shape_cast %77 : vector<16x1xi1> to vector<16x1xi1>
    %82 = vector.broadcast %81 : vector<16x1xi1> to vector<16x32xi1>
    %83 = arith.select %82, %73, %11 : vector<16x32xi1>, vector<16x32xf32>
    %c16 = arith.constant 16 : index
    %c0_22 = arith.constant 0 : index
    %84 = vector.load %arg10[%c16, %c0_22] : memref<64x256xf32, #tpu.memory_space<vmem>>, vector<16x128xf32>
    %cst_23 = arith.constant dense<0.000000e+00> : vector<16x128xf32>
    %85 = tpu.matmul %44, %9, %cst_23 {dimension_numbers = #tpu.dot_dimension_numbers<[1], [0], [0], [1], [0, 0, 1, 1], [], []>} : vector<16x32xf32>, vector<32x128xf32>, vector<16x128xf32> -> vector<16x128xf32>
    %86 = arith.addf %84, %85 : vector<16x128xf32>
    %87 = vector.extract_strided_slice %86 {offsets = [0, 0], sizes = [16, 32], strides = [1, 1]} : vector<16x128xf32> to vector<16x32xf32>
    %88 = arith.negf %87 : vector<16x32xf32>
    %89 = math.exp %88 : vector<16x32xf32>
    %cst_24 = arith.constant 1.000000e+00 : f32
    %90 = vector.broadcast %cst_24 : f32 to vector<16x32xf32>
    %91 = arith.addf %90, %89 : vector<16x32xf32>
    %92 = arith.divf %90, %91 : vector<16x32xf32>
    %93 = vector.extract_strided_slice %86 {offsets = [0, 32], sizes = [16, 32], strides = [1, 1]} : vector<16x128xf32> to vector<16x32xf32>
    %94 = arith.negf %93 : vector<16x32xf32>
    %95 = math.exp %94 : vector<16x32xf32>
    %cst_25 = arith.constant 1.000000e+00 : f32
    %96 = vector.broadcast %cst_25 : f32 to vector<16x32xf32>
    %97 = arith.addf %96, %95 : vector<16x32xf32>
    %98 = arith.divf %96, %97 : vector<16x32xf32>
    %99 = vector.extract_strided_slice %86 {offsets = [0, 64], sizes = [16, 32], strides = [1, 1]} : vector<16x128xf32> to vector<16x32xf32>
    %100 = math.tanh %99 : vector<16x32xf32>
    %101 = vector.extract_strided_slice %86 {offsets = [0, 96], sizes = [16, 32], strides = [1, 1]} : vector<16x128xf32> to vector<16x32xf32>
    %102 = arith.negf %101 : vector<16x32xf32>
    %103 = math.exp %102 : vector<16x32xf32>
    %cst_26 = arith.constant 1.000000e+00 : f32
    %104 = vector.broadcast %cst_26 : f32 to vector<16x32xf32>
    %105 = arith.addf %104, %103 : vector<16x32xf32>
    %106 = arith.divf %104, %105 : vector<16x32xf32>
    %107 = arith.mulf %98, %47 : vector<16x32xf32>
    %108 = arith.mulf %92, %100 : vector<16x32xf32>
    %109 = arith.addf %107, %108 : vector<16x32xf32>
    %110 = math.tanh %109 : vector<16x32xf32>
    %111 = arith.mulf %106, %110 : vector<16x32xf32>
    %112 = vector.extract_strided_slice %8 {offsets = [1, 0, 0], sizes = [1, 16, 1], strides = [1, 1, 1]} : vector<4x16x1xi1> to vector<1x16x1xi1>
    %113 = vector.shape_cast %112 : vector<1x16x1xi1> to vector<16x1xi1>
    %114 = vector.shape_cast %113 : vector<16x1xi1> to vector<16x1xi1>
    %115 = vector.broadcast %114 : vector<16x1xi1> to vector<16x32xi1>
    %116 = arith.select %115, %111, %44 : vector<16x32xi1>, vector<16x32xf32>
    %117 = vector.shape_cast %113 : vector<16x1xi1> to vector<16x1xi1>
    %118 = vector.broadcast %117 : vector<16x1xi1> to vector<16x32xi1>
    %119 = arith.select %118, %109, %47 : vector<16x32xi1>, vector<16x32xf32>
    %c32 = arith.constant 32 : index
    %c128_27 = arith.constant 128 : index
    %120 = vector.load %arg10[%c32, %c128_27] : memref<64x256xf32, #tpu.memory_space<vmem>>, vector<16x128xf32>
    %cst_28 = arith.constant dense<0.000000e+00> : vector<16x128xf32>
    %121 = tpu.matmul %80, %10, %cst_28 {dimension_numbers = #tpu.dot_dimension_numbers<[1], [0], [0], [1], [0, 0, 1, 1], [], []>} : vector<16x32xf32>, vector<32x128xf32>, vector<16x128xf32> -> vector<16x128xf32>
    %122 = arith.addf %120, %121 : vector<16x128xf32>
    %123 = vector.extract_strided_slice %122 {offsets = [0, 0], sizes = [16, 32], strides = [1, 1]} : vector<16x128xf32> to vector<16x32xf32>
    %124 = arith.negf %123 : vector<16x32xf32>
    %125 = math.exp %124 : vector<16x32xf32>
    %cst_29 = arith.constant 1.000000e+00 : f32
    %126 = vector.broadcast %cst_29 : f32 to vector<16x32xf32>
    %127 = arith.addf %126, %125 : vector<16x32xf32>
    %128 = arith.divf %126, %127 : vector<16x32xf32>
    %129 = vector.extract_strided_slice %122 {offsets = [0, 32], sizes = [16, 32], strides = [1, 1]} : vector<16x128xf32> to vector<16x32xf32>
    %130 = arith.negf %129 : vector<16x32xf32>
    %131 = math.exp %130 : vector<16x32xf32>
    %cst_30 = arith.constant 1.000000e+00 : f32
    %132 = vector.broadcast %cst_30 : f32 to vector<16x32xf32>
    %133 = arith.addf %132, %131 : vector<16x32xf32>
    %134 = arith.divf %132, %133 : vector<16x32xf32>
    %135 = vector.extract_strided_slice %122 {offsets = [0, 64], sizes = [16, 32], strides = [1, 1]} : vector<16x128xf32> to vector<16x32xf32>
    %136 = math.tanh %135 : vector<16x32xf32>
    %137 = vector.extract_strided_slice %122 {offsets = [0, 96], sizes = [16, 32], strides = [1, 1]} : vector<16x128xf32> to vector<16x32xf32>
    %138 = arith.negf %137 : vector<16x32xf32>
    %139 = math.exp %138 : vector<16x32xf32>
    %cst_31 = arith.constant 1.000000e+00 : f32
    %140 = vector.broadcast %cst_31 : f32 to vector<16x32xf32>
    %141 = arith.addf %140, %139 : vector<16x32xf32>
    %142 = arith.divf %140, %141 : vector<16x32xf32>
    %143 = arith.mulf %134, %83 : vector<16x32xf32>
    %144 = arith.mulf %128, %136 : vector<16x32xf32>
    %145 = arith.addf %143, %144 : vector<16x32xf32>
    %146 = math.tanh %145 : vector<16x32xf32>
    %147 = arith.mulf %142, %146 : vector<16x32xf32>
    %148 = vector.extract_strided_slice %8 {offsets = [2, 0, 0], sizes = [1, 16, 1], strides = [1, 1, 1]} : vector<4x16x1xi1> to vector<1x16x1xi1>
    %149 = vector.shape_cast %148 : vector<1x16x1xi1> to vector<16x1xi1>
    %150 = vector.shape_cast %149 : vector<16x1xi1> to vector<16x1xi1>
    %151 = vector.broadcast %150 : vector<16x1xi1> to vector<16x32xi1>
    %152 = arith.select %151, %147, %80 : vector<16x32xi1>, vector<16x32xf32>
    %153 = vector.shape_cast %149 : vector<16x1xi1> to vector<16x1xi1>
    %154 = vector.broadcast %153 : vector<16x1xi1> to vector<16x32xi1>
    %155 = arith.select %154, %145, %83 : vector<16x32xi1>, vector<16x32xf32>
    %c32_32 = arith.constant 32 : index
    %c0_33 = arith.constant 0 : index
    %156 = vector.load %arg10[%c32_32, %c0_33] : memref<64x256xf32, #tpu.memory_space<vmem>>, vector<16x128xf32>
    %cst_34 = arith.constant dense<0.000000e+00> : vector<16x128xf32>
    %157 = tpu.matmul %116, %9, %cst_34 {dimension_numbers = #tpu.dot_dimension_numbers<[1], [0], [0], [1], [0, 0, 1, 1], [], []>} : vector<16x32xf32>, vector<32x128xf32>, vector<16x128xf32> -> vector<16x128xf32>
    %158 = arith.addf %156, %157 : vector<16x128xf32>
    %159 = vector.extract_strided_slice %158 {offsets = [0, 0], sizes = [16, 32], strides = [1, 1]} : vector<16x128xf32> to vector<16x32xf32>
    %160 = arith.negf %159 : vector<16x32xf32>
    %161 = math.exp %160 : vector<16x32xf32>
    %cst_35 = arith.constant 1.000000e+00 : f32
    %162 = vector.broadcast %cst_35 : f32 to vector<16x32xf32>
    %163 = arith.addf %162, %161 : vector<16x32xf32>
    %164 = arith.divf %162, %163 : vector<16x32xf32>
    %165 = vector.extract_strided_slice %158 {offsets = [0, 32], sizes = [16, 32], strides = [1, 1]} : vector<16x128xf32> to vector<16x32xf32>
    %166 = arith.negf %165 : vector<16x32xf32>
    %167 = math.exp %166 : vector<16x32xf32>
    %cst_36 = arith.constant 1.000000e+00 : f32
    %168 = vector.broadcast %cst_36 : f32 to vector<16x32xf32>
    %169 = arith.addf %168, %167 : vector<16x32xf32>
    %170 = arith.divf %168, %169 : vector<16x32xf32>
    %171 = vector.extract_strided_slice %158 {offsets = [0, 64], sizes = [16, 32], strides = [1, 1]} : vector<16x128xf32> to vector<16x32xf32>
    %172 = math.tanh %171 : vector<16x32xf32>
    %173 = vector.extract_strided_slice %158 {offsets = [0, 96], sizes = [16, 32], strides = [1, 1]} : vector<16x128xf32> to vector<16x32xf32>
    %174 = arith.negf %173 : vector<16x32xf32>
    %175 = math.exp %174 : vector<16x32xf32>
    %cst_37 = arith.constant 1.000000e+00 : f32
    %176 = vector.broadcast %cst_37 : f32 to vector<16x32xf32>
    %177 = arith.addf %176, %175 : vector<16x32xf32>
    %178 = arith.divf %176, %177 : vector<16x32xf32>
    %179 = arith.mulf %170, %119 : vector<16x32xf32>
    %180 = arith.mulf %164, %172 : vector<16x32xf32>
    %181 = arith.addf %179, %180 : vector<16x32xf32>
    %182 = math.tanh %181 : vector<16x32xf32>
    %183 = arith.mulf %178, %182 : vector<16x32xf32>
    %184 = vector.extract_strided_slice %8 {offsets = [2, 0, 0], sizes = [1, 16, 1], strides = [1, 1, 1]} : vector<4x16x1xi1> to vector<1x16x1xi1>
    %185 = vector.shape_cast %184 : vector<1x16x1xi1> to vector<16x1xi1>
    %186 = vector.shape_cast %185 : vector<16x1xi1> to vector<16x1xi1>
    %187 = vector.broadcast %186 : vector<16x1xi1> to vector<16x32xi1>
    %188 = arith.select %187, %183, %116 : vector<16x32xi1>, vector<16x32xf32>
    %189 = vector.shape_cast %185 : vector<16x1xi1> to vector<16x1xi1>
    %190 = vector.broadcast %189 : vector<16x1xi1> to vector<16x32xi1>
    %191 = arith.select %190, %181, %119 : vector<16x32xi1>, vector<16x32xf32>
    %c16_38 = arith.constant 16 : index
    %c128_39 = arith.constant 128 : index
    %192 = vector.load %arg10[%c16_38, %c128_39] : memref<64x256xf32, #tpu.memory_space<vmem>>, vector<16x128xf32>
    %cst_40 = arith.constant dense<0.000000e+00> : vector<16x128xf32>
    %193 = tpu.matmul %152, %10, %cst_40 {dimension_numbers = #tpu.dot_dimension_numbers<[1], [0], [0], [1], [0, 0, 1, 1], [], []>} : vector<16x32xf32>, vector<32x128xf32>, vector<16x128xf32> -> vector<16x128xf32>
    %194 = arith.addf %192, %193 : vector<16x128xf32>
    %195 = vector.extract_strided_slice %194 {offsets = [0, 0], sizes = [16, 32], strides = [1, 1]} : vector<16x128xf32> to vector<16x32xf32>
    %196 = arith.negf %195 : vector<16x32xf32>
    %197 = math.exp %196 : vector<16x32xf32>
    %cst_41 = arith.constant 1.000000e+00 : f32
    %198 = vector.broadcast %cst_41 : f32 to vector<16x32xf32>
    %199 = arith.addf %198, %197 : vector<16x32xf32>
    %200 = arith.divf %198, %199 : vector<16x32xf32>
    %201 = vector.extract_strided_slice %194 {offsets = [0, 32], sizes = [16, 32], strides = [1, 1]} : vector<16x128xf32> to vector<16x32xf32>
    %202 = arith.negf %201 : vector<16x32xf32>
    %203 = math.exp %202 : vector<16x32xf32>
    %cst_42 = arith.constant 1.000000e+00 : f32
    %204 = vector.broadcast %cst_42 : f32 to vector<16x32xf32>
    %205 = arith.addf %204, %203 : vector<16x32xf32>
    %206 = arith.divf %204, %205 : vector<16x32xf32>
    %207 = vector.extract_strided_slice %194 {offsets = [0, 64], sizes = [16, 32], strides = [1, 1]} : vector<16x128xf32> to vector<16x32xf32>
    %208 = math.tanh %207 : vector<16x32xf32>
    %209 = vector.extract_strided_slice %194 {offsets = [0, 96], sizes = [16, 32], strides = [1, 1]} : vector<16x128xf32> to vector<16x32xf32>
    %210 = arith.negf %209 : vector<16x32xf32>
    %211 = math.exp %210 : vector<16x32xf32>
    %cst_43 = arith.constant 1.000000e+00 : f32
    %212 = vector.broadcast %cst_43 : f32 to vector<16x32xf32>
    %213 = arith.addf %212, %211 : vector<16x32xf32>
    %214 = arith.divf %212, %213 : vector<16x32xf32>
    %215 = arith.mulf %206, %155 : vector<16x32xf32>
    %216 = arith.mulf %200, %208 : vector<16x32xf32>
    %217 = arith.addf %215, %216 : vector<16x32xf32>
    %218 = math.tanh %217 : vector<16x32xf32>
    %219 = arith.mulf %214, %218 : vector<16x32xf32>
    %220 = vector.extract_strided_slice %8 {offsets = [1, 0, 0], sizes = [1, 16, 1], strides = [1, 1, 1]} : vector<4x16x1xi1> to vector<1x16x1xi1>
    %221 = vector.shape_cast %220 : vector<1x16x1xi1> to vector<16x1xi1>
    %222 = vector.shape_cast %221 : vector<16x1xi1> to vector<16x1xi1>
    %223 = vector.broadcast %222 : vector<16x1xi1> to vector<16x32xi1>
    %224 = arith.select %223, %219, %152 : vector<16x32xi1>, vector<16x32xf32>
    %225 = vector.shape_cast %221 : vector<16x1xi1> to vector<16x1xi1>
    %226 = vector.broadcast %225 : vector<16x1xi1> to vector<16x32xi1>
    %227 = arith.select %226, %217, %155 : vector<16x32xi1>, vector<16x32xf32>
    %c48_44 = arith.constant 48 : index
    %c0_45 = arith.constant 0 : index
    %228 = vector.load %arg10[%c48_44, %c0_45] : memref<64x256xf32, #tpu.memory_space<vmem>>, vector<16x128xf32>
    %cst_46 = arith.constant dense<0.000000e+00> : vector<16x128xf32>
    %229 = tpu.matmul %188, %9, %cst_46 {dimension_numbers = #tpu.dot_dimension_numbers<[1], [0], [0], [1], [0, 0, 1, 1], [], []>} : vector<16x32xf32>, vector<32x128xf32>, vector<16x128xf32> -> vector<16x128xf32>
    %230 = arith.addf %228, %229 : vector<16x128xf32>
    %231 = vector.extract_strided_slice %230 {offsets = [0, 0], sizes = [16, 32], strides = [1, 1]} : vector<16x128xf32> to vector<16x32xf32>
    %232 = arith.negf %231 : vector<16x32xf32>
    %233 = math.exp %232 : vector<16x32xf32>
    %cst_47 = arith.constant 1.000000e+00 : f32
    %234 = vector.broadcast %cst_47 : f32 to vector<16x32xf32>
    %235 = arith.addf %234, %233 : vector<16x32xf32>
    %236 = arith.divf %234, %235 : vector<16x32xf32>
    %237 = vector.extract_strided_slice %230 {offsets = [0, 32], sizes = [16, 32], strides = [1, 1]} : vector<16x128xf32> to vector<16x32xf32>
    %238 = arith.negf %237 : vector<16x32xf32>
    %239 = math.exp %238 : vector<16x32xf32>
    %cst_48 = arith.constant 1.000000e+00 : f32
    %240 = vector.broadcast %cst_48 : f32 to vector<16x32xf32>
    %241 = arith.addf %240, %239 : vector<16x32xf32>
    %242 = arith.divf %240, %241 : vector<16x32xf32>
    %243 = vector.extract_strided_slice %230 {offsets = [0, 64], sizes = [16, 32], strides = [1, 1]} : vector<16x128xf32> to vector<16x32xf32>
    %244 = math.tanh %243 : vector<16x32xf32>
    %245 = vector.extract_strided_slice %230 {offsets = [0, 96], sizes = [16, 32], strides = [1, 1]} : vector<16x128xf32> to vector<16x32xf32>
    %246 = arith.negf %245 : vector<16x32xf32>
    %247 = math.exp %246 : vector<16x32xf32>
    %cst_49 = arith.constant 1.000000e+00 : f32
    %248 = vector.broadcast %cst_49 : f32 to vector<16x32xf32>
    %249 = arith.addf %248, %247 : vector<16x32xf32>
    %250 = arith.divf %248, %249 : vector<16x32xf32>
    %251 = arith.mulf %242, %191 : vector<16x32xf32>
    %252 = arith.mulf %236, %244 : vector<16x32xf32>
    %253 = arith.addf %251, %252 : vector<16x32xf32>
    %254 = math.tanh %253 : vector<16x32xf32>
    %255 = arith.mulf %250, %254 : vector<16x32xf32>
    %256 = vector.extract_strided_slice %8 {offsets = [3, 0, 0], sizes = [1, 16, 1], strides = [1, 1, 1]} : vector<4x16x1xi1> to vector<1x16x1xi1>
    %257 = vector.shape_cast %256 : vector<1x16x1xi1> to vector<16x1xi1>
    %258 = vector.shape_cast %257 : vector<16x1xi1> to vector<16x1xi1>
    %259 = vector.broadcast %258 : vector<16x1xi1> to vector<16x32xi1>
    %260 = arith.select %259, %255, %188 : vector<16x32xi1>, vector<16x32xf32>
    %c0_50 = arith.constant 0 : index
    %c128_51 = arith.constant 128 : index
    %261 = vector.load %arg10[%c0_50, %c128_51] : memref<64x256xf32, #tpu.memory_space<vmem>>, vector<16x128xf32>
    %cst_52 = arith.constant dense<0.000000e+00> : vector<16x128xf32>
    %262 = tpu.matmul %224, %10, %cst_52 {dimension_numbers = #tpu.dot_dimension_numbers<[1], [0], [0], [1], [0, 0, 1, 1], [], []>} : vector<16x32xf32>, vector<32x128xf32>, vector<16x128xf32> -> vector<16x128xf32>
    %263 = arith.addf %261, %262 : vector<16x128xf32>
    %264 = vector.extract_strided_slice %263 {offsets = [0, 0], sizes = [16, 32], strides = [1, 1]} : vector<16x128xf32> to vector<16x32xf32>
    %265 = arith.negf %264 : vector<16x32xf32>
    %266 = math.exp %265 : vector<16x32xf32>
    %cst_53 = arith.constant 1.000000e+00 : f32
    %267 = vector.broadcast %cst_53 : f32 to vector<16x32xf32>
    %268 = arith.addf %267, %266 : vector<16x32xf32>
    %269 = arith.divf %267, %268 : vector<16x32xf32>
    %270 = vector.extract_strided_slice %263 {offsets = [0, 32], sizes = [16, 32], strides = [1, 1]} : vector<16x128xf32> to vector<16x32xf32>
    %271 = arith.negf %270 : vector<16x32xf32>
    %272 = math.exp %271 : vector<16x32xf32>
    %cst_54 = arith.constant 1.000000e+00 : f32
    %273 = vector.broadcast %cst_54 : f32 to vector<16x32xf32>
    %274 = arith.addf %273, %272 : vector<16x32xf32>
    %275 = arith.divf %273, %274 : vector<16x32xf32>
    %276 = vector.extract_strided_slice %263 {offsets = [0, 64], sizes = [16, 32], strides = [1, 1]} : vector<16x128xf32> to vector<16x32xf32>
    %277 = math.tanh %276 : vector<16x32xf32>
    %278 = vector.extract_strided_slice %263 {offsets = [0, 96], sizes = [16, 32], strides = [1, 1]} : vector<16x128xf32> to vector<16x32xf32>
    %279 = arith.negf %278 : vector<16x32xf32>
    %280 = math.exp %279 : vector<16x32xf32>
    %cst_55 = arith.constant 1.000000e+00 : f32
    %281 = vector.broadcast %cst_55 : f32 to vector<16x32xf32>
    %282 = arith.addf %281, %280 : vector<16x32xf32>
    %283 = arith.divf %281, %282 : vector<16x32xf32>
    %284 = arith.mulf %275, %227 : vector<16x32xf32>
    %285 = arith.mulf %269, %277 : vector<16x32xf32>
    %286 = arith.addf %284, %285 : vector<16x32xf32>
    %287 = math.tanh %286 : vector<16x32xf32>
    %288 = arith.mulf %283, %287 : vector<16x32xf32>
    %289 = vector.extract_strided_slice %8 {offsets = [0, 0, 0], sizes = [1, 16, 1], strides = [1, 1, 1]} : vector<4x16x1xi1> to vector<1x16x1xi1>
    %290 = vector.shape_cast %289 : vector<1x16x1xi1> to vector<16x1xi1>
    %291 = vector.shape_cast %290 : vector<16x1xi1> to vector<16x1xi1>
    %292 = vector.broadcast %291 : vector<16x1xi1> to vector<16x32xi1>
    %293 = arith.select %292, %288, %224 : vector<16x32xi1>, vector<16x32xf32>
    %294 = tpu.concatenate %260, %293 in 1 : vector<16x32xf32>, vector<16x32xf32> -> vector<16x64xf32>
    %c0_56 = arith.constant 0 : index
    %c0_57 = arith.constant 0 : index
    %295 = vector.load %arg3[%c0_56, %c0_57] : memref<2x16xf32, #tpu.memory_space<vmem>>, vector<2x16xf32>
    %cst_58 = arith.constant dense<0.000000e+00> : vector<2x64xf32>
    %296 = tpu.matmul %295, %294, %cst_58 {dimension_numbers = #tpu.dot_dimension_numbers<[1], [0], [0], [1], [0, 0, 1, 1], [], []>} : vector<2x16xf32>, vector<16x64xf32>, vector<2x64xf32> -> vector<2x64xf32>
    %c0_59 = arith.constant 0 : index
    %c0_60 = arith.constant 0 : index
    %297 = vector.load %arg2[%c0_59, %c0_60] : memref<2x32xf32, #tpu.memory_space<vmem>>, vector<2x32xf32>
    %298 = tpu.concatenate %297, %296 in 1 : vector<2x32xf32>, vector<2x64xf32> -> vector<2x96xf32>
    %c0_61 = arith.constant 0 : index
    %c0_62 = arith.constant 0 : index
    %299 = vector.load %arg7[%c0_61, %c0_62] : memref<96x128xf32, #tpu.memory_space<vmem>>, vector<96x128xf32>
    %cst_63 = arith.constant dense<0.000000e+00> : vector<2x128xf32>
    %300 = tpu.matmul %298, %299, %cst_63 {dimension_numbers = #tpu.dot_dimension_numbers<[1], [0], [0], [1], [0, 0, 1, 1], [], []>} : vector<2x96xf32>, vector<96x128xf32>, vector<2x128xf32> -> vector<2x128xf32>
    %c0_64 = arith.constant 0 : index
    %c0_65 = arith.constant 0 : index
    %301 = vector.load %arg8[%c0_64, %c0_65] : memref<1x128xf32, #tpu.memory_space<vmem>>, vector<1x128xf32>
    %302 = vector.broadcast %301 : vector<1x128xf32> to vector<2x128xf32>
    %303 = arith.addf %300, %302 : vector<2x128xf32>
    %304 = tpu.iota {dimensions = array<i32: 1>} : vector<2x128xi32>
    %c5_i32 = arith.constant 5 : i32
    %305 = vector.broadcast %c5_i32 : i32 to vector<2x128xi32>
    %306 = arith.cmpi slt, %304, %305 : vector<2x128xi32>
    %cst_66 = arith.constant -1.000000e+30 : f32
    %307 = vector.broadcast %cst_66 : f32 to vector<2x128xf32>
    %308 = arith.select %306, %303, %307 : vector<2x128xi1>, vector<2x128xf32>
    %cst_67 = arith.constant dense<0xFF800000> : vector<2xf32>
    %309 = vector.multi_reduction <maximumf>, %308, %cst_67 [1] : vector<2x128xf32> to vector<2xf32>
    %310 = vector.shape_cast %309 : vector<2xf32> to vector<2x1xf32>
    %311 = vector.broadcast %310 : vector<2x1xf32> to vector<2x128xf32>
    %312 = arith.subf %308, %311 : vector<2x128xf32>
    %313 = math.exp %312 : vector<2x128xf32>
    %cst_68 = arith.constant dense<0.000000e+00> : vector<2xf32>
    %314 = vector.multi_reduction <add>, %313, %cst_68 [1] : vector<2x128xf32> to vector<2xf32>
    %315 = vector.shape_cast %314 : vector<2xf32> to vector<2x1xf32>
    %316 = math.log %315 : vector<2x1xf32>
    %317 = vector.broadcast %316 : vector<2x1xf32> to vector<2x128xf32>
    %318 = arith.subf %312, %317 : vector<2x128xf32>
    %c0_69 = arith.constant 0 : index
    %c0_70 = arith.constant 0 : index
    %319 = vector.load %arg9[%c0_69, %c0_70] : memref<2x128xf32, #tpu.memory_space<vmem>>, vector<2x128xf32>
    tpu.vector_store %arg9[%c0_69, %c0_70], %318 {strides = array<i32>} : memref<2x128xf32, #tpu.memory_space<vmem>>, vector<2x128xf32>,
    return
  }
}

</mosaic_0001>

<llo_original>
// kernel: tpu_custom_call.1
$region0: #{tpu_custom_call.1}
  #allocation0 [shape = 'u32[]', space=smem, size = 0x4, offset = 0x4, fixed_abs, tag = 'smem constant byte address 0x4 - core index']
  #allocation1 [shape = 'u32[72,128]{1,0:T(1,128)}', space=vmem, size = 0x9000, scoped, tag = 'internal scratch']
  #allocation2 [shape = 'f32[64,256]{1,0:T(8,128)}', space=vmem, size = 0x10000, scoped, tag = 'scratch operand']
  %s0 = inlined_call_operand.vmem [shape: f32[64,30], index: 0, kind: input, shape index: {}]
  %s1 = inlined_call_operand.vmem [shape: s32[16,1], index: 1, kind: input, shape index: {}]
  %s2 = inlined_call_operand.vmem [shape: f32[2,32], index: 2, kind: input, shape index: {}]
  %s3 = inlined_call_operand.vmem [shape: f32[2,16], index: 3, kind: input, shape index: {}]
  %s4 = inlined_call_operand.hbm [shape: f32[30,256], index: 4, kind: input, shape index: {}]
  %s5 = inlined_call_operand.hbm [shape: f32[32,128], index: 5, kind: input, shape index: {}]
  %s6 = inlined_call_operand.hbm [shape: f32[32,128], index: 6, kind: input, shape index: {}]
  %s7 = inlined_call_operand.vmem [shape: f32[96,128], index: 7, kind: input, shape index: {}]
  %s8 = inlined_call_operand.vmem [shape: f32[1,128], index: 8, kind: input, shape index: {}]
  %s9 = inlined_call_operand.hbm [shape: f32[2,128], index: 9, kind: output, shape index: {}]
  %s10 = sld [smem:[#allocation0]]
  $region58: #{tpu_custom_call.1} parent=0
    _
  %s12 = ssub.s32 1, %s10
  %s13 = scalar_select 0, %s12, %s10
  $region1: #{tpu_custom_call.1} parent=0
    #allocation3 [shape = 'u8[32768]{0}', space=vmem, size = 0x8000, scoped, tag = 'input window, operand 4, single buffered']
    #allocation4 [shape = 's32[1]{0}', space=sflag, size = 0x4, scoped, tag = 'scoped memory for tpu_custom_call.1']
    #allocation5 [shape = 's32[1]{0}', space=sflag, size = 0x4, scoped, tag = 'scoped memory for tpu_custom_call.1']
    #allocation6 [shape = 'u8[16384]{0}', space=vmem, size = 0x4000, scoped, tag = 'input window, operand 5, single buffered']
    #allocation7 [shape = 's32[1]{0}', space=sflag, size = 0x4, scoped, tag = 'scoped memory for tpu_custom_call.1']
    #allocation8 [shape = 'u8[16384]{0}', space=vmem, size = 0x4000, scoped, tag = 'input window, operand 6, single buffered']
    #allocation9 [shape = 'u8[1024]{0}', space=vmem, size = 0x400, scoped, tag = 'output window, operand 0, single buffered']
    %14 = vsyncpa [#allocation4], 0
    %15 = vsyncpa [#allocation7], 0
    %16 = vsyncpa [#allocation5], 0
    // Predicated region
    $region2: #{tpu_custom_call.1} parent=1 // pred_check
      _
    $region3: #{tpu_custom_call.1} parent=1 // pred_check_branch
      %18 = sbr.rel (0) target = $region5
    $region4: #{tpu_custom_call.1} parent=1 // pred_region
      _
    $region5: #{tpu_custom_call.1} parent=1 // pred_fallthru
      _
    // Predicated region
    $region6: #{tpu_custom_call.1} parent=1 // pred_check
      _
    $region7: #{tpu_custom_call.1} parent=1 // pred_check_branch
      %20 = sbr.rel (0) target = $region9
    $region8: #{tpu_custom_call.1} parent=1 // pred_region
      _
    $region9: #{tpu_custom_call.1} parent=1 // pred_fallthru
      _
    // Predicated region
    $region10: #{tpu_custom_call.1} parent=1 // pred_check
      _
    $region11: #{tpu_custom_call.1} parent=1 // pred_check_branch
      %22 = sbr.rel (0) target = $region13
    $region12: #{tpu_custom_call.1} parent=1 // pred_region
      _
    $region13: #{tpu_custom_call.1} parent=1 // pred_fallthru
      _
    // Predicated region
    $region14: #{tpu_custom_call.1} parent=1 // pred_check
      _
    $region15: #{tpu_custom_call.1} parent=1 // pred_check_branch
      %24 = sbr.rel (0) target = $region17
    $region16: #{tpu_custom_call.1} parent=1 // pred_region
      _
    $region17: #{tpu_custom_call.1} parent=1 // pred_fallthru
      _
    // Predicated region
    $region18: #{tpu_custom_call.1} parent=1 // pred_check
      _
    $region19: #{tpu_custom_call.1} parent=1 // pred_check_branch
      %26 = sbr.rel (0) target = $region21
    $region20: #{tpu_custom_call.1} parent=1 // pred_region
      %28 = vsyncadd [#allocation4], 0
      %s29 = sshll.u32 %s4, 4
      %s30 = int_to_ptr.hbm [resolvable:$true] %s29
      %s31 = sshll.u32 [#allocation3], 4
      %s32 = int_to_ptr.vmem [resolvable:$true] %s31
      %37 = dma.hbm_to_vmem [thread:$0]  %s30, 1024, %s32, [#allocation4], 256, 256, 16
    $region21: #{tpu_custom_call.1} parent=1 // pred_fallthru
      _
    // Predicated region
    $region22: #{tpu_custom_call.1} parent=1 // pred_check
      _
    $region23: #{tpu_custom_call.1} parent=1 // pred_check_branch
      %39 = sbr.rel (0) target = $region25
    $region24: #{tpu_custom_call.1} parent=1 // pred_region
      %41 = vsyncadd [#allocation7], 0
      %s42 = sshll.u32 %s5, 4
      %s43 = int_to_ptr.hbm [resolvable:$true] %s42
      %s44 = sshll.u32 [#allocation6], 4
      %s45 = int_to_ptr.vmem [resolvable:$true] %s44
      %50 = dma.hbm_to_vmem [thread:$0]  %s43, 512, %s45, [#allocation7], 128, 128, 8
    $region25: #{tpu_custom_call.1} parent=1 // pred_fallthru
      _
    // Predicated region
    $region26: #{tpu_custom_call.1} parent=1 // pred_check
      _
    $region27: #{tpu_custom_call.1} parent=1 // pred_check_branch
      %52 = sbr.rel (0) target = $region29
    $region28: #{tpu_custom_call.1} parent=1 // pred_region
      %54 = vsyncadd [#allocation7], 0
      %s55 = sshll.u32 %s6, 4
      %s56 = int_to_ptr.hbm [resolvable:$true] %s55
      %s57 = sshll.u32 [#allocation8], 4
      %s58 = int_to_ptr.vmem [resolvable:$true] %s57
      %63 = dma.hbm_to_vmem [thread:$0]  %s56, 512, %s58, [#allocation7], 128, 128, 8
    $region29: #{tpu_custom_call.1} parent=1 // pred_fallthru
      _
    // Predicated region
    $region30: #{tpu_custom_call.1} parent=1 // pred_check
      _
    $region31: #{tpu_custom_call.1} parent=1 // pred_check_branch
      %65 = sbr.rel (0) target = $region33
    $region32: #{tpu_custom_call.1} parent=1 // pred_region
      _
    $region33: #{tpu_custom_call.1} parent=1 // pred_fallthru
      _
    // Predicated region
    $region34: #{tpu_custom_call.1} parent=1 // pred_check
      _
    $region35: #{tpu_custom_call.1} parent=1 // pred_check_branch
      %67 = sbr.rel (0) target = $region37
    $region36: #{tpu_custom_call.1} parent=1 // pred_region
      _
    $region37: #{tpu_custom_call.1} parent=1 // pred_fallthru
      _
    // Predicated region
    $region38: #{tpu_custom_call.1} parent=1 // pred_check
      _
    $region39: #{tpu_custom_call.1} parent=1 // pred_check_branch
      %69 = sbr.rel (0) target = $region41
    $region40: #{tpu_custom_call.1} parent=1 // pred_region
      %71 = dma.done [#allocation4], 1024
    $region41: #{tpu_custom_call.1} parent=1 // pred_fallthru
      _
    // Predicated region
    $region42: #{tpu_custom_call.1} parent=1 // pred_check
      _
    $region43: #{tpu_custom_call.1} parent=1 // pred_check_branch
      %73 = sbr.rel (0) target = $region45
    $region44: #{tpu_custom_call.1} parent=1 // pred_region
      %75 = dma.done [#allocation7], 512
    $region45: #{tpu_custom_call.1} parent=1 // pred_fallthru
      _
    // Predicated region
    $region46: #{tpu_custom_call.1} parent=1 // pred_check
      _
    $region47: #{tpu_custom_call.1} parent=1 // pred_check_branch
      %77 = sbr.rel (0) target = $region49
    $region48: #{tpu_custom_call.1} parent=1 // pred_region
      %79 = dma.done [#allocation7], 512
    $region49: #{tpu_custom_call.1} parent=1 // pred_fallthru
      _
    %v80 = vld [vmem:[%s0] sm:$0xff]
    %v81 = vld [vmem:[%s0 + $0x8] sm:$0xff]
    %v82 = vld [vmem:[%s0 + $0x10] sm:$0xff]
    %v83 = vld [vmem:[%s0 + $0x18] sm:$0xff]
    %v84 = vld [vmem:[%s0 + $0x20] sm:$0xff]
    %v85 = vld [vmem:[%s0 + $0x28] sm:$0xff]
    %v86 = vld [vmem:[%s0 + $0x30] sm:$0xff]
    %v87 = vld [vmem:[%s0 + $0x38] sm:$0xff]
    %v88 = vld [vmem:[#allocation3] sm:$0xff]
    %v89 = vld [vmem:[#allocation3 + $0x8] sm:$0xff]
    %v90 = vld [vmem:[#allocation3 + $0x10] sm:$0xff]
    %v91 = vld [vmem:[#allocation3 + $0x18] sm:$0xff]
    %v92 = vld [vmem:[#allocation3 + $0x20] sm:$0xff]
    %v93 = vld [vmem:[#allocation3 + $0x28] sm:$0xff]
    %v94 = vld [vmem:[#allocation3 + $0x30] sm:$0x3f]
    %v95 = vld [vmem:[#allocation3 + $0x38] sm:$0x3f]
    %vm96 = vcmask 244736
    %v98 = vsel %vm96, %v80, 0
    %v101 = vsel %vm96, %v81, 0
    %v104 = vsel %vm96, %v82, 0
    %v107 = vsel %vm96, %v83, 0
    %v110 = vsel %vm96, %v84, 0
    %v113 = vsel %vm96, %v85, 0
    %v116 = vsel %vm96, %v86, 0
    %v119 = vsel %vm96, %v87, 0
    %vm121 = vcmask 1045504
    %v123 = vsel %vm121, %v94, 0
    %v126 = vsel %vm121, %v95, 0
    %128 = vmatpush.msra.mxu0 0.0
    %129 = vmatpush.msra.mxu0 0.0
    %130 = vmatpush.msra.mxu0 0.0
    %131 = vmatpush.msra.mxu0 0.0
    %132 = vmatpush.msra.mxu0 0.0
    %133 = vmatpush.msra.mxu0 0.0
    %134 = vmatpush.msra.mxu0 0.0
    %135 = vmatpush.msra.mxu0 0.0
    %136 = vmatpush.msra.mxu0 0.0
    %137 = vmatpush.msra.mxu0 0.0
    %138 = vmatpush.msra.mxu0 0.0
    %139 = vmatpush.msra.mxu0 0.0
    %140 = vmatpush.msra.mxu0 %v123
    %141 = vmatpush.msra.mxu0 %v92
    %142 = vmatpush.msra.mxu0 %v90
    %143 = vmatpush.msra.mxu0 %v88
    %144 = vmatmul.f32.gmra.mxu0 %v98
    %v145 = vpop.f32.mrf.mxu0
    %v146 = vadd.f32 0.0, %v145
    %147 = vmatmul.f32.gmra.mxu0 %v101
    %v148 = vpop.f32.mrf.mxu0
    %v149 = vadd.f32 0.0, %v148
    %150 = vmatmul.f32.gmra.mxu0 %v104
    %v151 = vpop.f32.mrf.mxu0
    %v152 = vadd.f32 0.0, %v151
    %153 = vmatmul.f32.gmra.mxu0 %v107
    %v154 = vpop.f32.mrf.mxu0
    %v155 = vadd.f32 0.0, %v154
    %156 = vmatmul.f32.gmra.mxu0 %v110
    %v157 = vpop.f32.mrf.mxu0
    %v158 = vadd.f32 0.0, %v157
    %159 = vmatmul.f32.gmra.mxu0 %v113
    %v160 = vpop.f32.mrf.mxu0
    %v161 = vadd.f32 0.0, %v160
    %162 = vmatmul.f32.gmra.mxu0 %v116
    %v163 = vpop.f32.mrf.mxu0
    %v164 = vadd.f32 0.0, %v163
    %165 = vmatmul.f32.gmra.mxu0 %v119
    %v166 = vpop.f32.mrf.mxu0
    %v167 = vadd.f32 0.0, %v166
    %168 = vdwg.mxu0
    %169 = vmatpush.msra.mxu0 0.0
    %170 = vmatpush.msra.mxu0 0.0
    %171 = vmatpush.msra.mxu0 0.0
    %172 = vmatpush.msra.mxu0 0.0
    %173 = vmatpush.msra.mxu0 0.0
    %174 = vmatpush.msra.mxu0 0.0
    %175 = vmatpush.msra.mxu0 0.0
    %176 = vmatpush.msra.mxu0 0.0
    %177 = vmatpush.msra.mxu0 0.0
    %178 = vmatpush.msra.mxu0 0.0
    %179 = vmatpush.msra.mxu0 0.0
    %180 = vmatpush.msra.mxu0 0.0
    %181 = vmatpush.msra.mxu0 %v126
    %182 = vmatpush.msra.mxu0 %v93
    %183 = vmatpush.msra.mxu0 %v91
    %184 = vmatpush.msra.mxu0 %v89
    %185 = vmatmul.f32.gmra.mxu0 %v98
    %v186 = vpop.f32.mrf.mxu0
    %v187 = vadd.f32 0.0, %v186
    %188 = vmatmul.f32.gmra.mxu0 %v101
    %v189 = vpop.f32.mrf.mxu0
    %v190 = vadd.f32 0.0, %v189
    %191 = vmatmul.f32.gmra.mxu0 %v104
    %v192 = vpop.f32.mrf.mxu0
    %v193 = vadd.f32 0.0, %v192
    %194 = vmatmul.f32.gmra.mxu0 %v107
    %v195 = vpop.f32.mrf.mxu0
    %v196 = vadd.f32 0.0, %v195
    %197 = vmatmul.f32.gmra.mxu0 %v110
    %v198 = vpop.f32.mrf.mxu0
    %v199 = vadd.f32 0.0, %v198
    %200 = vmatmul.f32.gmra.mxu0 %v113
    %v201 = vpop.f32.mrf.mxu0
    %v202 = vadd.f32 0.0, %v201
    %203 = vmatmul.f32.gmra.mxu0 %v116
    %v204 = vpop.f32.mrf.mxu0
    %v205 = vadd.f32 0.0, %v204
    %206 = vmatmul.f32.gmra.mxu0 %v119
    %v207 = vpop.f32.mrf.mxu0
    %v208 = vadd.f32 0.0, %v207
    %209 = vdwg.mxu0
    %210 = vst [vmem:[#allocation2] sm:$0xff] %v146
    %211 = vst [vmem:[#allocation2 + $0x8] sm:$0xff] %v187
    %212 = vst [vmem:[#allocation2 + $0x10] sm:$0xff] %v149
    %213 = vst [vmem:[#allocation2 + $0x18] sm:$0xff] %v190
    %214 = vst [vmem:[#allocation2 + $0x20] sm:$0xff] %v152
    %215 = vst [vmem:[#allocation2 + $0x28] sm:$0xff] %v193
    %216 = vst [vmem:[#allocation2 + $0x30] sm:$0xff] %v155
    %217 = vst [vmem:[#allocation2 + $0x38] sm:$0xff] %v196
    %218 = vst [vmem:[#allocation2 + $0x40] sm:$0xff] %v158
    %219 = vst [vmem:[#allocation2 + $0x48] sm:$0xff] %v199
    %220 = vst [vmem:[#allocation2 + $0x50] sm:$0xff] %v161
    %221 = vst [vmem:[#allocation2 + $0x58] sm:$0xff] %v202
    %222 = vst [vmem:[#allocation2 + $0x60] sm:$0xff] %v164
    %223 = vst [vmem:[#allocation2 + $0x68] sm:$0xff] %v205
    %224 = vst [vmem:[#allocation2 + $0x70] sm:$0xff] %v167
    %225 = vst [vmem:[#allocation2 + $0x78] sm:$0xff] %v208
    %v226 = vld [vmem:[%s1] sm:$0xff]
    %v227 = vld [vmem:[%s1 + $0x8] sm:$0xff]
    %vm228 = vcmp.gt.s32.totalorder %v226, 0
    %vm229 = vcmp.gt.s32.totalorder %v227, 0
    %vm230 = vcmp.gt.s32.totalorder %v226, 1
    %vm231 = vcmp.gt.s32.totalorder %v227, 1
    %vm232 = vcmp.gt.s32.totalorder %v226, 2
    %vm233 = vcmp.gt.s32.totalorder %v227, 2
    %vm234 = vcmp.gt.s32.totalorder %v226, 3
    %vm235 = vcmp.gt.s32.totalorder %v227, 3
    %v236 = vld [vmem:[#allocation6] sm:$0xff]
    %v237 = vld [vmem:[#allocation6 + $0x8] sm:$0xff]
    %v238 = vld [vmem:[#allocation6 + $0x10] sm:$0xff]
    %v239 = vld [vmem:[#allocation6 + $0x18] sm:$0xff]
    %v240 = vld [vmem:[#allocation8] sm:$0xff]
    %v241 = vld [vmem:[#allocation8 + $0x8] sm:$0xff]
    %v242 = vld [vmem:[#allocation8 + $0x10] sm:$0xff]
    %v243 = vld [vmem:[#allocation8 + $0x18] sm:$0xff]
    %v244 = vld [vmem:[#allocation2] sm:$0xff]
    %v245 = vld [vmem:[#allocation2 + $0x10] sm:$0xff]
    %vm246 = vcmask 261120
    %v248 = vsel %vm246, 0.0, 0
    %250 = vmatpush.msra.mxu0 0.0
    %251 = vmatpush.msra.mxu0 0.0
    %252 = vmatpush.msra.mxu0 0.0
    %253 = vmatpush.msra.mxu0 0.0
    %254 = vmatpush.msra.mxu0 0.0
    %255 = vmatpush.msra.mxu0 0.0
    %256 = vmatpush.msra.mxu0 0.0
    %257 = vmatpush.msra.mxu0 0.0
    %258 = vmatpush.msra.mxu0 0.0
    %259 = vmatpush.msra.mxu0 0.0
    %260 = vmatpush.msra.mxu0 0.0
    %261 = vmatpush.msra.mxu0 0.0
    %262 = vmatpush.msra.mxu0 %v239
    %263 = vmatpush.msra.mxu0 %v238
    %264 = vmatpush.msra.mxu0 %v237
    %265 = vmatpush.msra.mxu0 %v236
    %266 = vmatmul.f32.gmra.mxu0 %v248
    %v267 = vpop.f32.mrf.mxu0
    %v268 = vadd.f32 0.0, %v267
    %269 = vmatmul.f32.gmra.mxu0 %v248
    %v270 = vpop.f32.mrf.mxu0
    %v271 = vadd.f32 0.0, %v270
    %272 = vdwg.mxu0
    %v273 = vadd.f32 %v244, %v268
    %v274 = vadd.f32 %v245, %v271
    %v275 = vxor.u32 %v273, 2147483648
    %v276 = vxor.u32 %v274, 2147483648
    %v277 = vmul.f32 %v275, 1.442695
    %v278 = vpow.pop %v277
    %v279 = vmul.f32 %v276, 1.442695
    %v280 = vpow.pop %v279
    %v281 = vadd.f32 %v278, 1.0
    %v282 = vadd.f32 %v280, 1.0
    %v283 = vrcp.pop %v281
    %v284 = vmul.f32 %v281, %v283
    %v285 = vsub.f32 1.0, %v284
    %v286 = vmul.f32 %v283, %v285
    %v287 = vadd.f32 %v283, %v286
    %vm288 = vweird.f32 %v281
    %vm289 = vweird.f32 %v283
    %vm290 = vmor %vm288, %vm289
    %v291 = vsel %vm290, %v283, %v287
    %v292 = vand.u32 2147483647, %v281
    %vm293 = vcmp.eq.f32.partialorder %v292, 8.507059e+37
    %v294 = vand.u32 %v281, 2147483648
    %v295 = vor.u32 1.1754944e-38, %v294
    %v296 = vsel %vm293, %v295, %v291
    %v297 = vmul.f32 1.0, %v296
    %v298 = vrcp.pop %v282
    %v299 = vmul.f32 %v282, %v298
    %v300 = vsub.f32 1.0, %v299
    %v301 = vmul.f32 %v298, %v300
    %v302 = vadd.f32 %v298, %v301
    %vm303 = vweird.f32 %v282
    %vm304 = vweird.f32 %v298
    %vm305 = vmor %vm303, %vm304
    %v306 = vsel %vm305, %v298, %v302
    %v307 = vand.u32 2147483647, %v282
    %vm308 = vcmp.eq.f32.partialorder %v307, 8.507059e+37
    %v309 = vand.u32 %v282, 2147483648
    %v310 = vor.u32 1.1754944e-38, %v309
    %v311 = vsel %vm308, %v310, %v306
    %v312 = vmul.f32 1.0, %v311
    %v313 = vtanh.pop %v273
    %v314 = vtanh.pop %v274
    %v315 = vmul.f32 %v297, 0.0
    %v316 = vmul.f32 %v312, 0.0
    %319 = vrot.lane.b32.xlu0 %v313, 64
    %v320 = vpop.permute.xlu0 %319
    %321 = vrot.lane.b32.xlu0 %v314, 64
    %v322 = vpop.permute.xlu0 %321
    %v325 = vmul.f32 %v297, %v320
    %v326 = vmul.f32 %v312, %v322
    %329 = vrot.lane.b32.xlu0 %v325, 32
    %v330 = vpop.permute.xlu0 %329
    %331 = vrot.lane.b32.xlu0 %v326, 32
    %v332 = vpop.permute.xlu0 %331
    %v335 = vadd.f32 %v315, %v330
    %v336 = vadd.f32 %v316, %v332
    %v337 = vtanh.pop %v335
    %v338 = vtanh.pop %v336
    %341 = vrot.lane.b32.xlu0 %v337, 64
    %v342 = vpop.permute.xlu0 %341
    %343 = vrot.lane.b32.xlu0 %v338, 64
    %v344 = vpop.permute.xlu0 %343
    %v347 = vmul.f32 %v297, %v342
    %v348 = vmul.f32 %v312, %v344
    %v349 = vsel %vm228, 1, 0
    %v350 = vsel %vm229, 1, 0
    %351 = vset.pattern.permute.xlu0 0
    %352 = vperm.xlu0 %351, %v349
    %v353 = vpop.permute.xlu0 %352
    %354 = vset.pattern.permute.xlu0 0
    %355 = vperm.xlu0 %354, %v350
    %v356 = vpop.permute.xlu0 %355
    %vm357 = vcmp.eq.s32.totalorder %v353, 1
    %vm358 = vcmp.eq.s32.totalorder %v356, 1
    %v359 = vsel %vm357, %v347, 0.0
    %v360 = vsel %vm358, %v348, 0.0
    %v361 = vsel %vm357, %v335, 0.0
    %v362 = vsel %vm358, %v336, 0.0
    %v363 = vld [vmem:[#allocation2 + $0x68] sm:$0xff]
    %v364 = vld [vmem:[#allocation2 + $0x78] sm:$0xff]
    %365 = vmatpush.msra.mxu0 0.0
    %366 = vmatpush.msra.mxu0 0.0
    %367 = vmatpush.msra.mxu0 0.0
    %368 = vmatpush.msra.mxu0 0.0
    %369 = vmatpush.msra.mxu0 0.0
    %370 = vmatpush.msra.mxu0 0.0
    %371 = vmatpush.msra.mxu0 0.0
    %372 = vmatpush.msra.mxu0 0.0
    %373 = vmatpush.msra.mxu0 0.0
    %374 = vmatpush.msra.mxu0 0.0
    %375 = vmatpush.msra.mxu0 0.0
    %376 = vmatpush.msra.mxu0 0.0
    %377 = vmatpush.msra.mxu0 %v243
    %378 = vmatpush.msra.mxu0 %v242
    %379 = vmatpush.msra.mxu0 %v241
    %380 = vmatpush.msra.mxu0 %v240
    %381 = vmatmul.f32.gmra.mxu0 %v248
    %v382 = vpop.f32.mrf.mxu0
    %v383 = vadd.f32 0.0, %v382
    %384 = vmatmul.f32.gmra.mxu0 %v248
    %v385 = vpop.f32.mrf.mxu0
    %v386 = vadd.f32 0.0, %v385
    %387 = vdwg.mxu0
    %v388 = vadd.f32 %v363, %v383
    %v389 = vadd.f32 %v364, %v386
    %v390 = vxor.u32 %v388, 2147483648
    %v391 = vxor.u32 %v389, 2147483648
    %v392 = vmul.f32 %v390, 1.442695
    %v393 = vpow.pop %v392
    %v394 = vmul.f32 %v391, 1.442695
    %v395 = vpow.pop %v394
    %v396 = vadd.f32 %v393, 1.0
    %v397 = vadd.f32 %v395, 1.0
    %v398 = vrcp.pop %v396
    %v399 = vmul.f32 %v396, %v398
    %v400 = vsub.f32 1.0, %v399
    %v401 = vmul.f32 %v398, %v400
    %v402 = vadd.f32 %v398, %v401
    %vm403 = vweird.f32 %v396
    %vm404 = vweird.f32 %v398
    %vm405 = vmor %vm403, %vm404
    %v406 = vsel %vm405, %v398, %v402
    %v407 = vand.u32 2147483647, %v396
    %vm408 = vcmp.eq.f32.partialorder %v407, 8.507059e+37
    %v409 = vand.u32 %v396, 2147483648
    %v410 = vor.u32 1.1754944e-38, %v409
    %v411 = vsel %vm408, %v410, %v406
    %v412 = vmul.f32 1.0, %v411
    %v413 = vrcp.pop %v397
    %v414 = vmul.f32 %v397, %v413
    %v415 = vsub.f32 1.0, %v414
    %v416 = vmul.f32 %v413, %v415
    %v417 = vadd.f32 %v413, %v416
    %vm418 = vweird.f32 %v397
    %vm419 = vweird.f32 %v413
    %vm420 = vmor %vm418, %vm419
    %v421 = vsel %vm420, %v413, %v417
    %v422 = vand.u32 2147483647, %v397
    %vm423 = vcmp.eq.f32.partialorder %v422, 8.507059e+37
    %v424 = vand.u32 %v397, 2147483648
    %v425 = vor.u32 1.1754944e-38, %v424
    %v426 = vsel %vm423, %v425, %v421
    %v427 = vmul.f32 1.0, %v426
    %v428 = vtanh.pop %v388
    %v429 = vtanh.pop %v389
    %v430 = vmul.f32 %v412, 0.0
    %v431 = vmul.f32 %v427, 0.0
    %434 = vrot.lane.b32.xlu0 %v428, 64
    %v435 = vpop.permute.xlu0 %434
    %436 = vrot.lane.b32.xlu0 %v429, 64
    %v437 = vpop.permute.xlu0 %436
    %v440 = vmul.f32 %v412, %v435
    %v441 = vmul.f32 %v427, %v437
    %444 = vrot.lane.b32.xlu0 %v440, 32
    %v445 = vpop.permute.xlu0 %444
    %446 = vrot.lane.b32.xlu0 %v441, 32
    %v447 = vpop.permute.xlu0 %446
    %v450 = vadd.f32 %v430, %v445
    %v451 = vadd.f32 %v431, %v447
    %v452 = vtanh.pop %v450
    %v453 = vtanh.pop %v451
    %456 = vrot.lane.b32.xlu0 %v452, 64
    %v457 = vpop.permute.xlu0 %456
    %458 = vrot.lane.b32.xlu0 %v453, 64
    %v459 = vpop.permute.xlu0 %458
    %v462 = vmul.f32 %v412, %v457
    %v463 = vmul.f32 %v427, %v459
    %v464 = vsel %vm234, 1, 0
    %v465 = vsel %vm235, 1, 0
    %466 = vset.pattern.permute.xlu0 0
    %467 = vperm.xlu0 %466, %v464
    %v468 = vpop.permute.xlu0 %467
    %469 = vset.pattern.permute.xlu0 0
    %470 = vperm.xlu0 %469, %v465
    %v471 = vpop.permute.xlu0 %470
    %vm472 = vcmp.eq.s32.totalorder %v468, 1
    %vm473 = vcmp.eq.s32.totalorder %v471, 1
    %v474 = vsel %vm472, %v462, 0.0
    %v475 = vsel %vm473, %v463, 0.0
    %v476 = vsel %vm472, %v450, 0.0
    %v477 = vsel %vm473, %v451, 0.0
    %v478 = vld [vmem:[#allocation2 + $0x20] sm:$0xff]
    %v479 = vld [vmem:[#allocation2 + $0x30] sm:$0xff]
    %482 = vrot.lane.b32.xlu0 %v359, 32
    %v483 = vpop.permute.xlu0 %482
    %484 = vrot.lane.b32.xlu0 %v360, 32
    %v485 = vpop.permute.xlu0 %484
    %v486 = vsel %vm246, %v483, 0
    %v488 = vsel %vm246, %v485, 0
    %490 = vmatpush.msra.mxu0 0.0
    %491 = vmatpush.msra.mxu0 0.0
    %492 = vmatpush.msra.mxu0 0.0
    %493 = vmatpush.msra.mxu0 0.0
    %494 = vmatpush.msra.mxu0 0.0
    %495 = vmatpush.msra.mxu0 0.0
    %496 = vmatpush.msra.mxu0 0.0
    %497 = vmatpush.msra.mxu0 0.0
    %498 = vmatpush.msra.mxu0 0.0
    %499 = vmatpush.msra.mxu0 0.0
    %500 = vmatpush.msra.mxu0 0.0
    %501 = vmatpush.msra.mxu0 0.0
    %502 = vmatpush.msra.mxu0 %v239
    %503 = vmatpush.msra.mxu0 %v238
    %504 = vmatpush.msra.mxu0 %v237
    %505 = vmatpush.msra.mxu0 %v236
    %506 = vmatmul.f32.gmra.mxu0 %v486
    %v507 = vpop.f32.mrf.mxu0
    %v508 = vadd.f32 0.0, %v507
    %509 = vmatmul.f32.gmra.mxu0 %v488
    %v510 = vpop.f32.mrf.mxu0
    %v511 = vadd.f32 0.0, %v510
    %512 = vdwg.mxu0
    %v513 = vadd.f32 %v478, %v508
    %v514 = vadd.f32 %v479, %v511
    %v515 = vxor.u32 %v513, 2147483648
    %v516 = vxor.u32 %v514, 2147483648
    %v517 = vmul.f32 %v515, 1.442695
    %v518 = vpow.pop %v517
    %v519 = vmul.f32 %v516, 1.442695
    %v520 = vpow.pop %v519
    %v521 = vadd.f32 %v518, 1.0
    %v522 = vadd.f32 %v520, 1.0
    %v523 = vrcp.pop %v521
    %v524 = vmul.f32 %v521, %v523
    %v525 = vsub.f32 1.0, %v524
    %v526 = vmul.f32 %v523, %v525
    %v527 = vadd.f32 %v523, %v526
    %vm528 = vweird.f32 %v521
    %vm529 = vweird.f32 %v523
    %vm530 = vmor %vm528, %vm529
    %v531 = vsel %vm530, %v523, %v527
    %v532 = vand.u32 2147483647, %v521
    %vm533 = vcmp.eq.f32.partialorder %v532, 8.507059e+37
    %v534 = vand.u32 %v521, 2147483648
    %v535 = vor.u32 1.1754944e-38, %v534
    %v536 = vsel %vm533, %v535, %v531
    %v537 = vmul.f32 1.0, %v536
    %v538 = vrcp.pop %v522
    %v539 = vmul.f32 %v522, %v538
    %v540 = vsub.f32 1.0, %v539
    %v541 = vmul.f32 %v538, %v540
    %v542 = vadd.f32 %v538, %v541
    %vm543 = vweird.f32 %v522
    %vm544 = vweird.f32 %v538
    %vm545 = vmor %vm543, %vm544
    %v546 = vsel %vm545, %v538, %v542
    %v547 = vand.u32 2147483647, %v522
    %vm548 = vcmp.eq.f32.partialorder %v547, 8.507059e+37
    %v549 = vand.u32 %v522, 2147483648
    %v550 = vor.u32 1.1754944e-38, %v549
    %v551 = vsel %vm548, %v550, %v546
    %v552 = vmul.f32 1.0, %v551
    %v553 = vtanh.pop %v513
    %v554 = vtanh.pop %v514
    %v555 = vmul.f32 %v537, %v361
    %v556 = vmul.f32 %v552, %v362
    %559 = vrot.lane.b32.xlu0 %v553, 64
    %v560 = vpop.permute.xlu0 %559
    %561 = vrot.lane.b32.xlu0 %v554, 64
    %v562 = vpop.permute.xlu0 %561
    %v565 = vmul.f32 %v537, %v560
    %v566 = vmul.f32 %v552, %v562
    %569 = vrot.lane.b32.xlu0 %v565, 32
    %v570 = vpop.permute.xlu0 %569
    %571 = vrot.lane.b32.xlu0 %v566, 32
    %v572 = vpop.permute.xlu0 %571
    %v575 = vadd.f32 %v555, %v570
    %v576 = vadd.f32 %v556, %v572
    %v577 = vtanh.pop %v575
    %v578 = vtanh.pop %v576
    %581 = vrot.lane.b32.xlu0 %v577, 64
    %v582 = vpop.permute.xlu0 %581
    %583 = vrot.lane.b32.xlu0 %v578, 64
    %v584 = vpop.permute.xlu0 %583
    %v587 = vmul.f32 %v537, %v582
    %v588 = vmul.f32 %v552, %v584
    %v589 = vsel %vm230, 1, 0
    %v590 = vsel %vm231, 1, 0
    %591 = vset.pattern.permute.xlu0 0
    %592 = vperm.xlu0 %591, %v589
    %v593 = vpop.permute.xlu0 %592
    %594 = vset.pattern.permute.xlu0 0
    %595 = vperm.xlu0 %594, %v590
    %v596 = vpop.permute.xlu0 %595
    %vm597 = vcmp.eq.s32.totalorder %v593, 1
    %vm598 = vcmp.eq.s32.totalorder %v596, 1
    %v599 = vsel %vm597, %v587, %v359
    %v600 = vsel %vm598, %v588, %v360
    %v601 = vsel %vm597, %v575, %v361
    %v602 = vsel %vm598, %v576, %v362
    %v603 = vld [vmem:[#allocation2 + $0x48] sm:$0xff]
    %v604 = vld [vmem:[#allocation2 + $0x58] sm:$0xff]
    %607 = vrot.lane.b32.xlu0 %v474, 32
    %v608 = vpop.permute.xlu0 %607
    %609 = vrot.lane.b32.xlu0 %v475, 32
    %v610 = vpop.permute.xlu0 %609
    %v611 = vsel %vm246, %v608, 0
    %v613 = vsel %vm246, %v610, 0
    %615 = vmatpush.msra.mxu0 0.0
    %616 = vmatpush.msra.mxu0 0.0
    %617 = vmatpush.msra.mxu0 0.0
    %618 = vmatpush.msra.mxu0 0.0
    %619 = vmatpush.msra.mxu0 0.0
    %620 = vmatpush.msra.mxu0 0.0
    %621 = vmatpush.msra.mxu0 0.0
    %622 = vmatpush.msra.mxu0 0.0
    %623 = vmatpush.msra.mxu0 0.0
    %624 = vmatpush.msra.mxu0 0.0
    %625 = vmatpush.msra.mxu0 0.0
    %626 = vmatpush.msra.mxu0 0.0
    %627 = vmatpush.msra.mxu0 %v243
    %628 = vmatpush.msra.mxu0 %v242
    %629 = vmatpush.msra.mxu0 %v241
    %630 = vmatpush.msra.mxu0 %v240
    %631 = vmatmul.f32.gmra.mxu0 %v611
    %v632 = vpop.f32.mrf.mxu0
    %v633 = vadd.f32 0.0, %v632
    %634 = vmatmul.f32.gmra.mxu0 %v613
    %v635 = vpop.f32.mrf.mxu0
    %v636 = vadd.f32 0.0, %v635
    %637 = vdwg.mxu0
    %v638 = vadd.f32 %v603, %v633
    %v639 = vadd.f32 %v604, %v636
    %v640 = vxor.u32 %v638, 2147483648
    %v641 = vxor.u32 %v639, 2147483648
    %v642 = vmul.f32 %v640, 1.442695
    %v643 = vpow.pop %v642
    %v644 = vmul.f32 %v641, 1.442695
    %v645 = vpow.pop %v644
    %v646 = vadd.f32 %v643, 1.0
    %v647 = vadd.f32 %v645, 1.0
    %v648 = vrcp.pop %v646
    %v649 = vmul.f32 %v646, %v648
    %v650 = vsub.f32 1.0, %v649
    %v651 = vmul.f32 %v648, %v650
    %v652 = vadd.f32 %v648, %v651
    %vm653 = vweird.f32 %v646
    %vm654 = vweird.f32 %v648
    %vm655 = vmor %vm653, %vm654
    %v656 = vsel %vm655, %v648, %v652
    %v657 = vand.u32 2147483647, %v646
    %vm658 = vcmp.eq.f32.partialorder %v657, 8.507059e+37
    %v659 = vand.u32 %v646, 2147483648
    %v660 = vor.u32 1.1754944e-38, %v659
    %v661 = vsel %vm658, %v660, %v656
    %v662 = vmul.f32 1.0, %v661
    %v663 = vrcp.pop %v647
    %v664 = vmul.f32 %v647, %v663
    %v665 = vsub.f32 1.0, %v664
    %v666 = vmul.f32 %v663, %v665
    %v667 = vadd.f32 %v663, %v666
    %vm668 = vweird.f32 %v647
    %vm669 = vweird.f32 %v663
    %vm670 = vmor %vm668, %vm669
    %v671 = vsel %vm670, %v663, %v667
    %v672 = vand.u32 2147483647, %v647
    %vm673 = vcmp.eq.f32.partialorder %v672, 8.507059e+37
    %v674 = vand.u32 %v647, 2147483648
    %v675 = vor.u32 1.1754944e-38, %v674
    %v676 = vsel %vm673, %v675, %v671
    %v677 = vmul.f32 1.0, %v676
    %v678 = vtanh.pop %v638
    %v679 = vtanh.pop %v639
    %v680 = vmul.f32 %v662, %v476
    %v681 = vmul.f32 %v677, %v477
    %684 = vrot.lane.b32.xlu0 %v678, 64
    %v685 = vpop.permute.xlu0 %684
    %686 = vrot.lane.b32.xlu0 %v679, 64
    %v687 = vpop.permute.xlu0 %686
    %v690 = vmul.f32 %v662, %v685
    %v691 = vmul.f32 %v677, %v687
    %694 = vrot.lane.b32.xlu0 %v690, 32
    %v695 = vpop.permute.xlu0 %694
    %696 = vrot.lane.b32.xlu0 %v691, 32
    %v697 = vpop.permute.xlu0 %696
    %v700 = vadd.f32 %v680, %v695
    %v701 = vadd.f32 %v681, %v697
    %v702 = vtanh.pop %v700
    %v703 = vtanh.pop %v701
    %706 = vrot.lane.b32.xlu0 %v702, 64
    %v707 = vpop.permute.xlu0 %706
    %708 = vrot.lane.b32.xlu0 %v703, 64
    %v709 = vpop.permute.xlu0 %708
    %v712 = vmul.f32 %v662, %v707
    %v713 = vmul.f32 %v677, %v709
    %v714 = vsel %vm232, 1, 0
    %v715 = vsel %vm233, 1, 0
    %716 = vset.pattern.permute.xlu0 0
    %717 = vperm.xlu0 %716, %v714
    %v718 = vpop.permute.xlu0 %717
    %719 = vset.pattern.permute.xlu0 0
    %720 = vperm.xlu0 %719, %v715
    %v721 = vpop.permute.xlu0 %720
    %vm722 = vcmp.eq.s32.totalorder %v718, 1
    %vm723 = vcmp.eq.s32.totalorder %v721, 1
    %v724 = vsel %vm722, %v712, %v474
    %v725 = vsel %vm723, %v713, %v475
    %v726 = vsel %vm722, %v700, %v476
    %v727 = vsel %vm723, %v701, %v477
    %v728 = vld [vmem:[#allocation2 + $0x40] sm:$0xff]
    %v729 = vld [vmem:[#allocation2 + $0x50] sm:$0xff]
    %732 = vrot.lane.b32.xlu0 %v599, 32
    %v733 = vpop.permute.xlu0 %732
    %734 = vrot.lane.b32.xlu0 %v600, 32
    %v735 = vpop.permute.xlu0 %734
    %v736 = vsel %vm246, %v733, 0
    %v738 = vsel %vm246, %v735, 0
    %740 = vmatpush.msra.mxu0 0.0
    %741 = vmatpush.msra.mxu0 0.0
    %742 = vmatpush.msra.mxu0 0.0
    %743 = vmatpush.msra.mxu0 0.0
    %744 = vmatpush.msra.mxu0 0.0
    %745 = vmatpush.msra.mxu0 0.0
    %746 = vmatpush.msra.mxu0 0.0
    %747 = vmatpush.msra.mxu0 0.0
    %748 = vmatpush.msra.mxu0 0.0
    %749 = vmatpush.msra.mxu0 0.0
    %750 = vmatpush.msra.mxu0 0.0
    %751 = vmatpush.msra.mxu0 0.0
    %752 = vmatpush.msra.mxu0 %v239
    %753 = vmatpush.msra.mxu0 %v238
    %754 = vmatpush.msra.mxu0 %v237
    %755 = vmatpush.msra.mxu0 %v236
    %756 = vmatmul.f32.gmra.mxu0 %v736
    %v757 = vpop.f32.mrf.mxu0
    %v758 = vadd.f32 0.0, %v757
    %759 = vmatmul.f32.gmra.mxu0 %v738
    %v760 = vpop.f32.mrf.mxu0
    %v761 = vadd.f32 0.0, %v760
    %762 = vdwg.mxu0
    %v763 = vadd.f32 %v728, %v758
    %v764 = vadd.f32 %v729, %v761
    %v765 = vxor.u32 %v763, 2147483648
    %v766 = vxor.u32 %v764, 2147483648
    %v767 = vmul.f32 %v765, 1.442695
    %v768 = vpow.pop %v767
    %v769 = vmul.f32 %v766, 1.442695
    %v770 = vpow.pop %v769
    %v771 = vadd.f32 %v768, 1.0
    %v772 = vadd.f32 %v770, 1.0
    %v773 = vrcp.pop %v771
    %v774 = vmul.f32 %v771, %v773
    %v775 = vsub.f32 1.0, %v774
    %v776 = vmul.f32 %v773, %v775
    %v777 = vadd.f32 %v773, %v776
    %vm778 = vweird.f32 %v771
    %vm779 = vweird.f32 %v773
    %vm780 = vmor %vm778, %vm779
    %v781 = vsel %vm780, %v773, %v777
    %v782 = vand.u32 2147483647, %v771
    %vm783 = vcmp.eq.f32.partialorder %v782, 8.507059e+37
    %v784 = vand.u32 %v771, 2147483648
    %v785 = vor.u32 1.1754944e-38, %v784
    %v786 = vsel %vm783, %v785, %v781
    %v787 = vmul.f32 1.0, %v786
    %v788 = vrcp.pop %v772
    %v789 = vmul.f32 %v772, %v788
    %v790 = vsub.f32 1.0, %v789
    %v791 = vmul.f32 %v788, %v790
    %v792 = vadd.f32 %v788, %v791
    %vm793 = vweird.f32 %v772
    %vm794 = vweird.f32 %v788
    %vm795 = vmor %vm793, %vm794
    %v796 = vsel %vm795, %v788, %v792
    %v797 = vand.u32 2147483647, %v772
    %vm798 = vcmp.eq.f32.partialorder %v797, 8.507059e+37
    %v799 = vand.u32 %v772, 2147483648
    %v800 = vor.u32 1.1754944e-38, %v799
    %v801 = vsel %vm798, %v800, %v796
    %v802 = vmul.f32 1.0, %v801
    %v803 = vtanh.pop %v763
    %v804 = vtanh.pop %v764
    %v805 = vmul.f32 %v787, %v601
    %v806 = vmul.f32 %v802, %v602
    %809 = vrot.lane.b32.xlu0 %v803, 64
    %v810 = vpop.permute.xlu0 %809
    %811 = vrot.lane.b32.xlu0 %v804, 64
    %v812 = vpop.permute.xlu0 %811
    %v815 = vmul.f32 %v787, %v810
    %v816 = vmul.f32 %v802, %v812
    %819 = vrot.lane.b32.xlu0 %v815, 32
    %v820 = vpop.permute.xlu0 %819
    %821 = vrot.lane.b32.xlu0 %v816, 32
    %v822 = vpop.permute.xlu0 %821
    %v825 = vadd.f32 %v805, %v820
    %v826 = vadd.f32 %v806, %v822
    %v827 = vtanh.pop %v825
    %v828 = vtanh.pop %v826
    %831 = vrot.lane.b32.xlu0 %v827, 64
    %v832 = vpop.permute.xlu0 %831
    %833 = vrot.lane.b32.xlu0 %v828, 64
    %v834 = vpop.permute.xlu0 %833
    %v837 = vmul.f32 %v787, %v832
    %v838 = vmul.f32 %v802, %v834
    %v839 = vsel %vm722, %v837, %v599
    %v840 = vsel %vm723, %v838, %v600
    %v841 = vsel %vm722, %v825, %v601
    %v842 = vsel %vm723, %v826, %v602
    %v843 = vld [vmem:[#allocation2 + $0x28] sm:$0xff]
    %v844 = vld [vmem:[#allocation2 + $0x38] sm:$0xff]
    %847 = vrot.lane.b32.xlu0 %v724, 32
    %v848 = vpop.permute.xlu0 %847
    %849 = vrot.lane.b32.xlu0 %v725, 32
    %v850 = vpop.permute.xlu0 %849
    %v851 = vsel %vm246, %v848, 0
    %v853 = vsel %vm246, %v850, 0
    %855 = vmatpush.msra.mxu0 0.0
    %856 = vmatpush.msra.mxu0 0.0
    %857 = vmatpush.msra.mxu0 0.0
    %858 = vmatpush.msra.mxu0 0.0
    %859 = vmatpush.msra.mxu0 0.0
    %860 = vmatpush.msra.mxu0 0.0
    %861 = vmatpush.msra.mxu0 0.0
    %862 = vmatpush.msra.mxu0 0.0
    %863 = vmatpush.msra.mxu0 0.0
    %864 = vmatpush.msra.mxu0 0.0
    %865 = vmatpush.msra.mxu0 0.0
    %866 = vmatpush.msra.mxu0 0.0
    %867 = vmatpush.msra.mxu0 %v243
    %868 = vmatpush.msra.mxu0 %v242
    %869 = vmatpush.msra.mxu0 %v241
    %870 = vmatpush.msra.mxu0 %v240
    %871 = vmatmul.f32.gmra.mxu0 %v851
    %v872 = vpop.f32.mrf.mxu0
    %v873 = vadd.f32 0.0, %v872
    %874 = vmatmul.f32.gmra.mxu0 %v853
    %v875 = vpop.f32.mrf.mxu0
    %v876 = vadd.f32 0.0, %v875
    %877 = vdwg.mxu0
    %v878 = vadd.f32 %v843, %v873
    %v879 = vadd.f32 %v844, %v876
    %v880 = vxor.u32 %v878, 2147483648
    %v881 = vxor.u32 %v879, 2147483648
    %v882 = vmul.f32 %v880, 1.442695
    %v883 = vpow.pop %v882
    %v884 = vmul.f32 %v881, 1.442695
    %v885 = vpow.pop %v884
    %v886 = vadd.f32 %v883, 1.0
    %v887 = vadd.f32 %v885, 1.0
    %v888 = vrcp.pop %v886
    %v889 = vmul.f32 %v886, %v888
    %v890 = vsub.f32 1.0, %v889
    %v891 = vmul.f32 %v888, %v890
    %v892 = vadd.f32 %v888, %v891
    %vm893 = vweird.f32 %v886
    %vm894 = vweird.f32 %v888
    %vm895 = vmor %vm893, %vm894
    %v896 = vsel %vm895, %v888, %v892
    %v897 = vand.u32 2147483647, %v886
    %vm898 = vcmp.eq.f32.partialorder %v897, 8.507059e+37
    %v899 = vand.u32 %v886, 2147483648
    %v900 = vor.u32 1.1754944e-38, %v899
    %v901 = vsel %vm898, %v900, %v896
    %v902 = vmul.f32 1.0, %v901
    %v903 = vrcp.pop %v887
    %v904 = vmul.f32 %v887, %v903
    %v905 = vsub.f32 1.0, %v904
    %v906 = vmul.f32 %v903, %v905
    %v907 = vadd.f32 %v903, %v906
    %vm908 = vweird.f32 %v887
    %vm909 = vweird.f32 %v903
    %vm910 = vmor %vm908, %vm909
    %v911 = vsel %vm910, %v903, %v907
    %v912 = vand.u32 2147483647, %v887
    %vm913 = vcmp.eq.f32.partialorder %v912, 8.507059e+37
    %v914 = vand.u32 %v887, 2147483648
    %v915 = vor.u32 1.1754944e-38, %v914
    %v916 = vsel %vm913, %v915, %v911
    %v917 = vmul.f32 1.0, %v916
    %v918 = vtanh.pop %v878
    %v919 = vtanh.pop %v879
    %v920 = vmul.f32 %v902, %v726
    %v921 = vmul.f32 %v917, %v727
    %924 = vrot.lane.b32.xlu0 %v918, 64
    %v925 = vpop.permute.xlu0 %924
    %926 = vrot.lane.b32.xlu0 %v919, 64
    %v927 = vpop.permute.xlu0 %926
    %v930 = vmul.f32 %v902, %v925
    %v931 = vmul.f32 %v917, %v927
    %934 = vrot.lane.b32.xlu0 %v930, 32
    %v935 = vpop.permute.xlu0 %934
    %936 = vrot.lane.b32.xlu0 %v931, 32
    %v937 = vpop.permute.xlu0 %936
    %v940 = vadd.f32 %v920, %v935
    %v941 = vadd.f32 %v921, %v937
    %v942 = vtanh.pop %v940
    %v943 = vtanh.pop %v941
    %946 = vrot.lane.b32.xlu0 %v942, 64
    %v947 = vpop.permute.xlu0 %946
    %948 = vrot.lane.b32.xlu0 %v943, 64
    %v949 = vpop.permute.xlu0 %948
    %v952 = vmul.f32 %v902, %v947
    %v953 = vmul.f32 %v917, %v949
    %v954 = vsel %vm597, %v952, %v724
    %v955 = vsel %vm598, %v953, %v725
    %v956 = vsel %vm597, %v940, %v726
    %v957 = vsel %vm598, %v941, %v727
    %v958 = vld [vmem:[#allocation2 + $0x60] sm:$0xff]
    %v959 = vld [vmem:[#allocation2 + $0x70] sm:$0xff]
    %962 = vrot.lane.b32.xlu0 %v839, 32
    %v963 = vpop.permute.xlu0 %962
    %964 = vrot.lane.b32.xlu0 %v840, 32
    %v965 = vpop.permute.xlu0 %964
    %v966 = vsel %vm246, %v963, 0
    %v968 = vsel %vm246, %v965, 0
    %970 = vmatpush.msra.mxu0 0.0
    %971 = vmatpush.msra.mxu0 0.0
    %972 = vmatpush.msra.mxu0 0.0
    %973 = vmatpush.msra.mxu0 0.0
    %974 = vmatpush.msra.mxu0 0.0
    %975 = vmatpush.msra.mxu0 0.0
    %976 = vmatpush.msra.mxu0 0.0
    %977 = vmatpush.msra.mxu0 0.0
    %978 = vmatpush.msra.mxu0 0.0
    %979 = vmatpush.msra.mxu0 0.0
    %980 = vmatpush.msra.mxu0 0.0
    %981 = vmatpush.msra.mxu0 0.0
    %982 = vmatpush.msra.mxu0 %v239
    %983 = vmatpush.msra.mxu0 %v238
    %984 = vmatpush.msra.mxu0 %v237
    %985 = vmatpush.msra.mxu0 %v236
    %986 = vmatmul.f32.gmra.mxu0 %v966
    %v987 = vpop.f32.mrf.mxu0
    %v988 = vadd.f32 0.0, %v987
    %989 = vmatmul.f32.gmra.mxu0 %v968
    %v990 = vpop.f32.mrf.mxu0
    %v991 = vadd.f32 0.0, %v990
    %992 = vdwg.mxu0
    %v993 = vadd.f32 %v958, %v988
    %v994 = vadd.f32 %v959, %v991
    %v995 = vxor.u32 %v993, 2147483648
    %v996 = vxor.u32 %v994, 2147483648
    %v997 = vmul.f32 %v995, 1.442695
    %v998 = vpow.pop %v997
    %v999 = vmul.f32 %v996, 1.442695
    %v1000 = vpow.pop %v999
    %v1001 = vadd.f32 %v998, 1.0
    %v1002 = vadd.f32 %v1000, 1.0
    %v1003 = vrcp.pop %v1001
    %v1004 = vmul.f32 %v1001, %v1003
    %v1005 = vsub.f32 1.0, %v1004
    %v1006 = vmul.f32 %v1003, %v1005
    %v1007 = vadd.f32 %v1003, %v1006
    %vm1008 = vweird.f32 %v1001
    %vm1009 = vweird.f32 %v1003
    %vm1010 = vmor %vm1008, %vm1009
    %v1011 = vsel %vm1010, %v1003, %v1007
    %v1012 = vand.u32 2147483647, %v1001
    %vm1013 = vcmp.eq.f32.partialorder %v1012, 8.507059e+37
    %v1014 = vand.u32 %v1001, 2147483648
    %v1015 = vor.u32 1.1754944e-38, %v1014
    %v1016 = vsel %vm1013, %v1015, %v1011
    %v1017 = vmul.f32 1.0, %v1016
    %v1018 = vrcp.pop %v1002
    %v1019 = vmul.f32 %v1002, %v1018
    %v1020 = vsub.f32 1.0, %v1019
    %v1021 = vmul.f32 %v1018, %v1020
    %v1022 = vadd.f32 %v1018, %v1021
    %vm1023 = vweird.f32 %v1002
    %vm1024 = vweird.f32 %v1018
    %vm1025 = vmor %vm1023, %vm1024
    %v1026 = vsel %vm1025, %v1018, %v1022
    %v1027 = vand.u32 2147483647, %v1002
    %vm1028 = vcmp.eq.f32.partialorder %v1027, 8.507059e+37
    %v1029 = vand.u32 %v1002, 2147483648
    %v1030 = vor.u32 1.1754944e-38, %v1029
    %v1031 = vsel %vm1028, %v1030, %v1026
    %v1032 = vmul.f32 1.0, %v1031
    %v1033 = vtanh.pop %v993
    %v1034 = vtanh.pop %v994
    %v1035 = vmul.f32 %v1017, %v841
    %v1036 = vmul.f32 %v1032, %v842
    %1039 = vrot.lane.b32.xlu0 %v1033, 64
    %v1040 = vpop.permute.xlu0 %1039
    %1041 = vrot.lane.b32.xlu0 %v1034, 64
    %v1042 = vpop.permute.xlu0 %1041
    %v1045 = vmul.f32 %v1017, %v1040
    %v1046 = vmul.f32 %v1032, %v1042
    %1049 = vrot.lane.b32.xlu0 %v1045, 32
    %v1050 = vpop.permute.xlu0 %1049
    %1051 = vrot.lane.b32.xlu0 %v1046, 32
    %v1052 = vpop.permute.xlu0 %1051
    %v1055 = vadd.f32 %v1035, %v1050
    %v1056 = vadd.f32 %v1036, %v1052
    %v1057 = vtanh.pop %v1055
    %v1058 = vtanh.pop %v1056
    %1061 = vrot.lane.b32.xlu0 %v1057, 64
    %v1062 = vpop.permute.xlu0 %1061
    %1063 = vrot.lane.b32.xlu0 %v1058, 64
    %v1064 = vpop.permute.xlu0 %1063
    %v1067 = vmul.f32 %v1017, %v1062
    %v1068 = vmul.f32 %v1032, %v1064
    %v1069 = vsel %vm472, %v1067, %v839
    %v1070 = vsel %vm473, %v1068, %v840
    %v1071 = vld [vmem:[#allocation2 + $0x8] sm:$0xff]
    %v1072 = vld [vmem:[#allocation2 + $0x18] sm:$0xff]
    %1075 = vrot.lane.b32.xlu0 %v954, 32
    %v1076 = vpop.permute.xlu0 %1075
    %1077 = vrot.lane.b32.xlu0 %v955, 32
    %v1078 = vpop.permute.xlu0 %1077
    %v1079 = vsel %vm246, %v1076, 0
    %v1081 = vsel %vm246, %v1078, 0
    %1083 = vmatpush.msra.mxu0 0.0
    %1084 = vmatpush.msra.mxu0 0.0
    %1085 = vmatpush.msra.mxu0 0.0
    %1086 = vmatpush.msra.mxu0 0.0
    %1087 = vmatpush.msra.mxu0 0.0
    %1088 = vmatpush.msra.mxu0 0.0
    %1089 = vmatpush.msra.mxu0 0.0
    %1090 = vmatpush.msra.mxu0 0.0
    %1091 = vmatpush.msra.mxu0 0.0
    %1092 = vmatpush.msra.mxu0 0.0
    %1093 = vmatpush.msra.mxu0 0.0
    %1094 = vmatpush.msra.mxu0 0.0
    %1095 = vmatpush.msra.mxu0 %v243
    %1096 = vmatpush.msra.mxu0 %v242
    %1097 = vmatpush.msra.mxu0 %v241
    %1098 = vmatpush.msra.mxu0 %v240
    %1099 = vmatmul.f32.gmra.mxu0 %v1079
    %v1100 = vpop.f32.mrf.mxu0
    %v1101 = vadd.f32 0.0, %v1100
    %1102 = vmatmul.f32.gmra.mxu0 %v1081
    %v1103 = vpop.f32.mrf.mxu0
    %v1104 = vadd.f32 0.0, %v1103
    %1105 = vdwg.mxu0
    %v1106 = vadd.f32 %v1071, %v1101
    %v1107 = vadd.f32 %v1072, %v1104
    %v1108 = vxor.u32 %v1106, 2147483648
    %v1109 = vxor.u32 %v1107, 2147483648
    %v1110 = vmul.f32 %v1108, 1.442695
    %v1111 = vpow.pop %v1110
    %v1112 = vmul.f32 %v1109, 1.442695
    %v1113 = vpow.pop %v1112
    %v1114 = vadd.f32 %v1111, 1.0
    %v1115 = vadd.f32 %v1113, 1.0
    %v1116 = vrcp.pop %v1114
    %v1117 = vmul.f32 %v1114, %v1116
    %v1118 = vsub.f32 1.0, %v1117
    %v1119 = vmul.f32 %v1116, %v1118
    %v1120 = vadd.f32 %v1116, %v1119
    %vm1121 = vweird.f32 %v1114
    %vm1122 = vweird.f32 %v1116
    %vm1123 = vmor %vm1121, %vm1122
    %v1124 = vsel %vm1123, %v1116, %v1120
    %v1125 = vand.u32 2147483647, %v1114
    %vm1126 = vcmp.eq.f32.partialorder %v1125, 8.507059e+37
    %v1127 = vand.u32 %v1114, 2147483648
    %v1128 = vor.u32 1.1754944e-38, %v1127
    %v1129 = vsel %vm1126, %v1128, %v1124
    %v1130 = vmul.f32 1.0, %v1129
    %v1131 = vrcp.pop %v1115
    %v1132 = vmul.f32 %v1115, %v1131
    %v1133 = vsub.f32 1.0, %v1132
    %v1134 = vmul.f32 %v1131, %v1133
    %v1135 = vadd.f32 %v1131, %v1134
    %vm1136 = vweird.f32 %v1115
    %vm1137 = vweird.f32 %v1131
    %vm1138 = vmor %vm1136, %vm1137
    %v1139 = vsel %vm1138, %v1131, %v1135
    %v1140 = vand.u32 2147483647, %v1115
    %vm1141 = vcmp.eq.f32.partialorder %v1140, 8.507059e+37
    %v1142 = vand.u32 %v1115, 2147483648
    %v1143 = vor.u32 1.1754944e-38, %v1142
    %v1144 = vsel %vm1141, %v1143, %v1139
    %v1145 = vmul.f32 1.0, %v1144
    %v1146 = vtanh.pop %v1106
    %v1147 = vtanh.pop %v1107
    %v1148 = vmul.f32 %v1130, %v956
    %v1149 = vmul.f32 %v1145, %v957
    %1152 = vrot.lane.b32.xlu0 %v1146, 64
    %v1153 = vpop.permute.xlu0 %1152
    %1154 = vrot.lane.b32.xlu0 %v1147, 64
    %v1155 = vpop.permute.xlu0 %1154
    %v1158 = vmul.f32 %v1130, %v1153
    %v1159 = vmul.f32 %v1145, %v1155
    %1162 = vrot.lane.b32.xlu0 %v1158, 32
    %v1163 = vpop.permute.xlu0 %1162
    %1164 = vrot.lane.b32.xlu0 %v1159, 32
    %v1165 = vpop.permute.xlu0 %1164
    %v1168 = vadd.f32 %v1148, %v1163
    %v1169 = vadd.f32 %v1149, %v1165
    %v1170 = vtanh.pop %v1168
    %v1171 = vtanh.pop %v1169
    %1174 = vrot.lane.b32.xlu0 %v1170, 64
    %v1175 = vpop.permute.xlu0 %1174
    %1176 = vrot.lane.b32.xlu0 %v1171, 64
    %v1177 = vpop.permute.xlu0 %1176
    %v1180 = vmul.f32 %v1130, %v1175
    %v1181 = vmul.f32 %v1145, %v1177
    %v1182 = vsel %vm357, %v1180, %v954
    %v1183 = vsel %vm358, %v1181, %v955
    %1186 = vrot.lane.b32.xlu0 %v1069, 32
    %v1187 = vpop.permute.xlu0 %1186
    %1188 = vrot.lane.b32.xlu0 %v1070, 32
    %v1189 = vpop.permute.xlu0 %1188
    %1194 = vrot.lane.b32.xlu0 %v1182, 64
    %v1195 = vpop.permute.xlu0 %1194
    %1196 = vrot.lane.b32.xlu0 %v1183, 64
    %v1197 = vpop.permute.xlu0 %1196
    %v1200 = vsel %vm246, %v1187, %v1195
    %v1201 = vsel %vm246, %v1189, %v1197
    %v1202 = vld [vmem:[%s3] sm:$0x3]
    %vm1203 = vcmask 130048
    %v1205 = vsel %vm1203, %v1202, 0
    %1207 = vmatpush.msra.mxu0 0.0
    %1208 = vmatpush.msra.mxu0 0.0
    %1209 = vmatpush.msra.mxu0 0.0
    %1210 = vmatpush.msra.mxu0 0.0
    %1211 = vmatpush.msra.mxu0 0.0
    %1212 = vmatpush.msra.mxu0 0.0
    %1213 = vmatpush.msra.mxu0 0.0
    %1214 = vmatpush.msra.mxu0 0.0
    %1215 = vmatpush.msra.mxu0 0.0
    %1216 = vmatpush.msra.mxu0 0.0
    %1217 = vmatpush.msra.mxu0 0.0
    %1218 = vmatpush.msra.mxu0 0.0
    %1219 = vmatpush.msra.mxu0 0.0
    %1220 = vmatpush.msra.mxu0 0.0
    %1221 = vmatpush.msra.mxu0 %v1201
    %1222 = vmatpush.msra.mxu0 %v1200
    %1223 = vmatmul.f32.gmra.mxu0 %v1205
    %v1224 = vpop.f32.mrf.mxu0
    %v1225 = vadd.f32 0.0, %v1224
    %1226 = vdwg.mxu0
    %v1227 = vld [vmem:[%s2] sm:$0x3]
    %1229 = vrot.lane.b32.xlu0 %v1225, 32
    %v1230 = vpop.permute.xlu0 %1229
    %v1232 = vsel %vm246, %v1227, %v1230
    %v1233 = vld [vmem:[%s7] sm:$0xff]
    %v1234 = vld [vmem:[%s7 + $0x8] sm:$0xff]
    %v1235 = vld [vmem:[%s7 + $0x10] sm:$0xff]
    %v1236 = vld [vmem:[%s7 + $0x18] sm:$0xff]
    %v1237 = vld [vmem:[%s7 + $0x20] sm:$0xff]
    %v1238 = vld [vmem:[%s7 + $0x28] sm:$0xff]
    %v1239 = vld [vmem:[%s7 + $0x30] sm:$0xff]
    %v1240 = vld [vmem:[%s7 + $0x38] sm:$0xff]
    %v1241 = vld [vmem:[%s7 + $0x40] sm:$0xff]
    %v1242 = vld [vmem:[%s7 + $0x48] sm:$0xff]
    %v1243 = vld [vmem:[%s7 + $0x50] sm:$0xff]
    %v1244 = vld [vmem:[%s7 + $0x58] sm:$0xff]
    %v1245 = vld [vmem:[%s8] sm:$0x1]
    %v1247 = vperm.slane %v1245, 0
    %vm1249 = vcmask 785408
    %v1251 = vsel %vm1249, %v1232, 0
    %1253 = vmatpush.msra.mxu0 0.0
    %1254 = vmatpush.msra.mxu0 0.0
    %1255 = vmatpush.msra.mxu0 0.0
    %1256 = vmatpush.msra.mxu0 0.0
    %1257 = vmatpush.msra.mxu0 %v1244
    %1258 = vmatpush.msra.mxu0 %v1243
    %1259 = vmatpush.msra.mxu0 %v1242
    %1260 = vmatpush.msra.mxu0 %v1241
    %1261 = vmatpush.msra.mxu0 %v1240
    %1262 = vmatpush.msra.mxu0 %v1239
    %1263 = vmatpush.msra.mxu0 %v1238
    %1264 = vmatpush.msra.mxu0 %v1237
    %1265 = vmatpush.msra.mxu0 %v1236
    %1266 = vmatpush.msra.mxu0 %v1235
    %1267 = vmatpush.msra.mxu0 %v1234
    %1268 = vmatpush.msra.mxu0 %v1233
    %1269 = vmatmul.f32.gmra.mxu0 %v1251
    %v1270 = vpop.f32.mrf.mxu0
    %v1271 = vadd.f32 %v1247, %v1270
    %1272 = vdwg.mxu0
    %v1273 = vlaneseq
    %v1274 = vand.u32 %v1273, 127
    %vm1275 = vcmp.lt.s32.totalorder %v1274, 5
    %v1276 = vsel %vm1275, %v1271, -1e+30
    %vm1277 = vcmask 1041408
    %v1278 = vsel %vm1277, %v1276, -inf
    %1279 = vmax.xlane.f32.xlu0 %v1278
    %v1280 = vpop.xlane.xlu0 %1279
    %v1281 = vsub.f32 %v1276, %v1280
    %v1282 = vmul.f32 %v1281, 1.442695
    %v1283 = vpow.pop %v1282
    %v1284 = vsel %vm1277, %v1283, 0.0
    %1285 = vadd.xlane.f32.xlu0 %v1284
    %v1286 = vpop.xlane.xlu0 %1285
    %v1287 = vlog2.pop %v1286
    %v1288 = vmul.f32 %v1287, 0.6931472
    %v1289 = vsub.f32 %v1281, %v1288
    %1290 = vst [vmem:[#allocation9] sm:$0x3] %v1289
    // Predicated region
    $region50: #{tpu_custom_call.1} parent=1 // pred_check
      _
    $region51: #{tpu_custom_call.1} parent=1 // pred_check_branch
      %1292 = sbr.rel (0) target = $region53
    $region52: #{tpu_custom_call.1} parent=1 // pred_region
      %1294 = vsyncadd [#allocation5], 0
      %s1296 = sshll.u32 [#allocation9], 4
      %s1297 = int_to_ptr.vmem [resolvable:$true] %s1296
      %s1298 = sshll.u32 %s9, 4
      %s1299 = int_to_ptr.hbm [resolvable:$true] %s1298
      %1301 = dma.vmem_to_hbm [thread:$0]  %s1297, 32, %s1299, [#allocation5]
    $region53: #{tpu_custom_call.1} parent=1 // pred_fallthru
      _
    // Predicated region
    $region54: #{tpu_custom_call.1} parent=1 // pred_check
      _
    $region55: #{tpu_custom_call.1} parent=1 // pred_check_branch
      %1303 = sbr.rel (0) target = $region57
    $region56: #{tpu_custom_call.1} parent=1 // pred_region
      %1305 = dma.done [#allocation5], 32
    $region57: #{tpu_custom_call.1} parent=1 // pred_fallthru
      _
    %1306 = vsyncpa [#allocation4], 1
    %1307 = vsyncpa [#allocation7], 1
    %1308 = vsyncpa [#allocation5], 1

</llo_original>
